<compile_context>
chip_gen: v7x
topology: tpu7x:2x2x1
jax: 0.10.0
libtpu: 0.0.40
codegen_flags: <defaults>
</compile_context>

<pallas_src>
import functools

import jax
import jax.numpy as jnp
from jax.experimental import pallas as pl
from jax.experimental.pallas import tpu as pltpu

HIDDEN = 1024
CHUNK = 256            # hidden-dim chunk processed per unrolled step
_LANE = 128
_SUBLANE = 8


def _round_up(n, m):
    return ((n + m - 1) // m) * m


def _cdiv(a, b):
    return -(-a // b)


def least_squares_kernel(xT_ref, w1_ref, w2_ref, b2_ref, o_ref):
    # xT_ref: (P, TB)      batch on the lane axis
    # w1_ref: (HIDDEN, P)  resident, torch (out, in) layout
    # w2_ref: (HIDDEN, 1)  resident column
    # b2_ref: (1, 1)       SMEM scalar
    # o_ref : (1, TB)      lane-dense output row
    xT = xT_ref[...]
    acc = jnp.zeros((CHUNK, xT.shape[-1]), jnp.float32)
    # Static 4-way unroll over HIDDEN: per chunk MXU dot -> EUP tanh -> VPU
    # scale + accumulate; the full (TB, 1024) hidden never exists in VMEM.
    for c in range(HIDDEN // CHUNK):
        lo = c * CHUNK
        h = jnp.tanh(
            jnp.dot(w1_ref[lo:lo + CHUNK, :], xT,
                    preferred_element_type=jnp.float32))
        acc = acc + h * w2_ref[lo:lo + CHUNK, :]
    # Single cross-sublane reduce (XLU) -> result is already lane-dense (1, TB).
    o_ref[...] = jnp.sum(acc, axis=0, keepdims=True) + b2_ref[0, 0]


def _tile_vmem_bytes(p, tb, itemsize):
    """Rough per-tile VMEM footprint (double-buffered inputs + temporaries)."""
    xt = 2 * _round_up(p, _SUBLANE) * tb * itemsize       # x^T tile (dbl-buffered)
    w1 = 2 * HIDDEN * _round_up(p, _LANE) * itemsize      # resident W1 (lane padded)
    w2 = 2 * HIDDEN * _LANE * 4                           # resident w2 column
    out = 2 * _SUBLANE * tb * 4                           # (1, TB) output row
    tmp = 3 * CHUNK * tb * 4                              # logits / tanh / acc temporaries
    return xt + w1 + w2 + out + tmp


def _vmem_budget_bytes():
    try:  # physical VMEM of the attached chip (128 MiB v5e/v6e, 64 MiB v7x)
        cap = pltpu.get_tpu_info().vmem_capacity_bytes
    except Exception:
        cap = 64 * 1024 * 1024   # conservative fallback
    return int(cap * 3 // 4)


@functools.partial(jax.jit,
                   static_argnames=("tb", "core_parallel", "compute_dtype"))
def least_squares_forward(x, w1, w2_col, b2, *, tb=2048, core_parallel=False,
                          compute_dtype=jnp.float32):
    """x: (B, P) f32; w1: (1024, P); w2_col: (1024, 1); b2: (1, 1) -> (B,)."""
    B, P = x.shape
    itemsize = jnp.dtype(compute_dtype).itemsize

    # Balanced, lane-aligned batch tile, shrunk until one tile fits the chip's
    # VMEM budget (keeps double-buffering alive on v7x's smaller VMEM).
    nt = _cdiv(B, tb)
    TB = _round_up(_cdiv(B, nt), _LANE)
    budget = _vmem_budget_bytes()
    while TB > _LANE and _tile_vmem_bytes(P, TB, itemsize) > budget:
        TB = max(_LANE, _round_up(TB // 2, _LANE))
    nt = _cdiv(B, TB)
    Bp = nt * TB

    # Lane-dense plumbing: batch on the lane axis.  Padded columns produce
    # tanh(0) * w2 + b2 = b2 and are sliced off below.
    xT = x.astype(compute_dtype).T
    if Bp != B:
        xT = jnp.pad(xT, ((0, 0), (0, Bp - B)))
    w1c = w1.astype(compute_dtype)

    vmem_limit = int(min(max(2 * _tile_vmem_bytes(P, TB, itemsize),
                             32 * 1024 * 1024), budget))
    # CORE_PARALLEL splits batch tiles across v7x's two TensorCores; plain
    # "parallel" is the safe default for single-TC v5e/v6e.
    batch_sem = pltpu.CORE_PARALLEL if core_parallel else "parallel"

    cost = pl.CostEstimate(
        flops=2 * Bp * P * HIDDEN + 3 * Bp * HIDDEN,
        transcendentals=Bp * HIDDEN,
        bytes_accessed=itemsize * (Bp * P + HIDDEN * P)
        + 4 * (HIDDEN + 1 + Bp),
    )

    out = pl.pallas_call(
        least_squares_kernel,
        out_shape=jax.ShapeDtypeStruct((1, Bp), jnp.float32),
        grid=(nt,),
        in_specs=[
            pl.BlockSpec((P, TB), lambda i: (0, i)),            # x^T: tiled over B
            pl.BlockSpec((HIDDEN, P), lambda i: (0, 0)),        # W1: resident
            pl.BlockSpec((HIDDEN, 1), lambda i: (0, 0)),        # w2 column: resident
            pl.BlockSpec(memory_space=pltpu.MemorySpace.SMEM),  # b2 scalar
        ],
        out_specs=pl.BlockSpec((1, TB), lambda i: (0, i)),      # lane-dense row
        compiler_params=pltpu.CompilerParams(
            dimension_semantics=(batch_sem,),
            vmem_limit_bytes=vmem_limit,
        ),
        cost_estimate=cost,
    )(xT, w1c, w2_col, b2)

    # torch's .squeeze() removes the trailing size-1 dim -> shape (B,).
    # (PyTorch would return a 0-d tensor for B == 1; here it stays shape (1,).)
    return out[0, :B]


def init_params(key, num_parameters):
    """Deterministic init mimicking torch.nn.Linear defaults (U(+/- 1/sqrt(fan_in)))."""
    k1, k2, k3 = jax.random.split(key, 3)
    bound1 = 1.0 / jnp.sqrt(num_parameters)
    w1 = jax.random.uniform(k1, (HIDDEN, num_parameters), jnp.float32,
                            -bound1, bound1)              # torch layout (out, in)
    bound2 = 1.0 / jnp.sqrt(HIDDEN)
    w2 = jax.random.uniform(k2, (1, HIDDEN), jnp.float32, -bound2, bound2)
    b2 = jax.random.uniform(k3, (1,), jnp.float32, -bound2, bound2)
    # kernel-friendly: W1 kept in torch layout, W2 as a (1024, 1) column,
    # b2 as a (1, 1) SMEM scalar.
    return w1, w2.T, b2.reshape(1, 1)


def _reference(x, w1, w2_col, b2):
    h = jnp.tanh(x @ w1.T)
    return (h @ w2_col + b2[0, 0]).reshape(x.shape[0])


if __name__ == "__main__":
    key = jax.random.PRNGKey(0)
    num_parameters = 32
    kx1, kx2, kx3, kp = jax.random.split(key, 4)
    w1, w2_col, b2 = init_params(kp, num_parameters)

    # case 1: tiny batch (single, padded tile)
    x1 = jax.random.normal(kx1, (8, num_parameters), jnp.float32)
    o1 = jax.block_until_ready(least_squares_forward(x1, w1, w2_col, b2))
    r1 = _reference(x1, w1, w2_col, b2)
    assert o1.shape == (8,)
    assert jnp.allclose(o1, r1, atol=1e-5, rtol=1e-5)

    # case 2: ragged batch exercising the padded tail columns
    x2 = jax.random.normal(kx2, (10, num_parameters), jnp.float32)
    o2 = jax.block_until_ready(least_squares_forward(x2, w1, w2_col, b2))
    r2 = _reference(x2, w1, w2_col, b2)
    assert o2.shape == (10,)
    assert jnp.allclose(o2, r2, atol=1e-5, rtol=1e-5)

    # case 3: multiple batch tiles (grid > 1) with resident weights
    x3 = jax.random.normal(kx3, (300, num_parameters), jnp.float32)
    o3 = jax.block_until_ready(
        least_squares_forward(x3, w1, w2_col, b2, tb=128))
    r3 = _reference(x3, w1, w2_col, b2)
    assert o3.shape == (300,)
    assert jnp.allclose(o3, r3, atol=1e-5, rtol=1e-5)

    print("KERNEL_OK")
</pallas_src>

<mosaic_0001>
module attributes {stable_mosaic.version = 11 : i64} {
  func.func @least_squares_kernel(%arg0: i32, %arg1: memref<32x128xf32, #tpu.memory_space<vmem>>, %arg2: memref<1024x32xf32, #tpu.memory_space<vmem>>, %arg3: memref<1024x1xf32, #tpu.memory_space<vmem>>, %arg4: memref<1x1xf32, #tpu.memory_space<smem>>, %arg5: memref<1x128xf32, #tpu.memory_space<vmem>>) attributes {dimension_semantics = [#tpu.dimension_semantics<parallel>], iteration_bounds = array<i64: 1>, scalar_prefetch = 0 : i64, scratch_operands = 0 : i64, tpu.core_type = #tpu.core_type<tc>, window_params = [{transform_indices = @transform_0, window_bounds = array<i64: 32, 128>}, {pipeline_mode = #tpu.pipeline_mode<synchronous>, transform_indices = @transform_1, window_bounds = array<i64: 1024, 32>}, {pipeline_mode = #tpu.pipeline_mode<synchronous>, transform_indices = @transform_2, window_bounds = array<i64: 1024, 1>}, {transform_indices = @transform_3, window_bounds = array<i64: 1, 1>}, {transform_indices = @transform_4, window_bounds = array<i64: 1, 128>}]} {
    %c0 = arith.constant 0 : index
    %c0_0 = arith.constant 0 : index
    %0 = vector.load %arg1[%c0, %c0_0] : memref<32x128xf32, #tpu.memory_space<vmem>>, vector<32x128xf32>
    %cst = arith.constant 0.000000e+00 : f32
    %1 = vector.broadcast %cst : f32 to vector<256x128xf32>
    %c0_1 = arith.constant 0 : index
    %c0_2 = arith.constant 0 : index
    %2 = vector.load %arg2[%c0_1, %c0_2] : memref<1024x32xf32, #tpu.memory_space<vmem>>, vector<256x32xf32>
    %cst_3 = arith.constant dense<0.000000e+00> : vector<256x128xf32>
    %3 = tpu.matmul %2, %0, %cst_3 {dimension_numbers = #tpu.dot_dimension_numbers<[1], [0], [0], [1], [0, 0, 1, 1], [], []>} : vector<256x32xf32>, vector<32x128xf32>, vector<256x128xf32> -> vector<256x128xf32>
    %4 = math.tanh %3 : vector<256x128xf32>
    %c0_4 = arith.constant 0 : index
    %c0_5 = arith.constant 0 : index
    %5 = vector.load %arg3[%c0_4, %c0_5] : memref<1024x1xf32, #tpu.memory_space<vmem>>, vector<256x1xf32>
    %6 = vector.broadcast %5 : vector<256x1xf32> to vector<256x128xf32>
    %7 = arith.mulf %4, %6 : vector<256x128xf32>
    %8 = arith.addf %1, %7 : vector<256x128xf32>
    %c256 = arith.constant 256 : index
    %c0_6 = arith.constant 0 : index
    %9 = vector.load %arg2[%c256, %c0_6] : memref<1024x32xf32, #tpu.memory_space<vmem>>, vector<256x32xf32>
    %cst_7 = arith.constant dense<0.000000e+00> : vector<256x128xf32>
    %10 = tpu.matmul %9, %0, %cst_7 {dimension_numbers = #tpu.dot_dimension_numbers<[1], [0], [0], [1], [0, 0, 1, 1], [], []>} : vector<256x32xf32>, vector<32x128xf32>, vector<256x128xf32> -> vector<256x128xf32>
    %11 = math.tanh %10 : vector<256x128xf32>
    %c256_8 = arith.constant 256 : index
    %c0_9 = arith.constant 0 : index
    %12 = vector.load %arg3[%c256_8, %c0_9] : memref<1024x1xf32, #tpu.memory_space<vmem>>, vector<256x1xf32>
    %13 = vector.broadcast %12 : vector<256x1xf32> to vector<256x128xf32>
    %14 = arith.mulf %11, %13 : vector<256x128xf32>
    %15 = arith.addf %8, %14 : vector<256x128xf32>
    %c512 = arith.constant 512 : index
    %c0_10 = arith.constant 0 : index
    %16 = vector.load %arg2[%c512, %c0_10] : memref<1024x32xf32, #tpu.memory_space<vmem>>, vector<256x32xf32>
    %cst_11 = arith.constant dense<0.000000e+00> : vector<256x128xf32>
    %17 = tpu.matmul %16, %0, %cst_11 {dimension_numbers = #tpu.dot_dimension_numbers<[1], [0], [0], [1], [0, 0, 1, 1], [], []>} : vector<256x32xf32>, vector<32x128xf32>, vector<256x128xf32> -> vector<256x128xf32>
    %18 = math.tanh %17 : vector<256x128xf32>
    %c512_12 = arith.constant 512 : index
    %c0_13 = arith.constant 0 : index
    %19 = vector.load %arg3[%c512_12, %c0_13] : memref<1024x1xf32, #tpu.memory_space<vmem>>, vector<256x1xf32>
    %20 = vector.broadcast %19 : vector<256x1xf32> to vector<256x128xf32>
    %21 = arith.mulf %18, %20 : vector<256x128xf32>
    %22 = arith.addf %15, %21 : vector<256x128xf32>
    %c768 = arith.constant 768 : index
    %c0_14 = arith.constant 0 : index
    %23 = vector.load %arg2[%c768, %c0_14] : memref<1024x32xf32, #tpu.memory_space<vmem>>, vector<256x32xf32>
    %cst_15 = arith.constant dense<0.000000e+00> : vector<256x128xf32>
    %24 = tpu.matmul %23, %0, %cst_15 {dimension_numbers = #tpu.dot_dimension_numbers<[1], [0], [0], [1], [0, 0, 1, 1], [], []>} : vector<256x32xf32>, vector<32x128xf32>, vector<256x128xf32> -> vector<256x128xf32>
    %25 = math.tanh %24 : vector<256x128xf32>
    %c768_16 = arith.constant 768 : index
    %c0_17 = arith.constant 0 : index
    %26 = vector.load %arg3[%c768_16, %c0_17] : memref<1024x1xf32, #tpu.memory_space<vmem>>, vector<256x1xf32>
    %27 = vector.broadcast %26 : vector<256x1xf32> to vector<256x128xf32>
    %28 = arith.mulf %25, %27 : vector<256x128xf32>
    %29 = arith.addf %22, %28 : vector<256x128xf32>
    %cst_18 = arith.constant dense<0.000000e+00> : vector<128xf32>
    %30 = vector.multi_reduction <add>, %29, %cst_18 [0] : vector<256x128xf32> to vector<128xf32>
    %31 = vector.shape_cast %30 : vector<128xf32> to vector<1x128xf32>
    %c0_19 = arith.constant 0 : index
    %c0_20 = arith.constant 0 : index
    %32 = memref.load %arg4[%c0_19, %c0_20] : memref<1x1xf32, #tpu.memory_space<smem>>
    %33 = vector.broadcast %32 : f32 to vector<1x128xf32>
    %34 = arith.addf %31, %33 : vector<1x128xf32>
    %c0_21 = arith.constant 0 : index
    %c0_22 = arith.constant 0 : index
    %35 = vector.load %arg5[%c0_21, %c0_22] : memref<1x128xf32, #tpu.memory_space<vmem>>, vector<1x128xf32>
    tpu.vector_store %arg5[%c0_21, %c0_22], %34 {strides = array<i32>} : memref<1x128xf32, #tpu.memory_space<vmem>>, vector<1x128xf32>,
    return
  }
  func.func @transform_0(%arg0: i32) -> (i32, i32) {
    %c0_i32 = arith.constant 0 : i32
    %c0_i32_0 = arith.constant 0 : i32
    return %c0_i32, %arg0 : i32, i32
  }
  func.func @transform_1(%arg0: i32) -> (i32, i32) {
    %c0_i32 = arith.constant 0 : i32
    %c0_i32_0 = arith.constant 0 : i32
    %c0_i32_1 = arith.constant 0 : i32
    return %c0_i32, %c0_i32_0 : i32, i32
  }
  func.func @transform_2(%arg0: i32) -> (i32, i32) {
    %c0_i32 = arith.constant 0 : i32
    %c0_i32_0 = arith.constant 0 : i32
    %c0_i32_1 = arith.constant 0 : i32
    return %c0_i32, %c0_i32_0 : i32, i32
  }
  func.func @transform_3(%arg0: i32) -> (i32, i32) {
    %c0_i32 = arith.constant 0 : i32
    %c0_i32_0 = arith.constant 0 : i32
    %c0_i32_1 = arith.constant 0 : i32
    return %c0_i32, %c0_i32_0 : i32, i32
  }
  func.func @transform_4(%arg0: i32) -> (i32, i32) {
    %c0_i32 = arith.constant 0 : i32
    %c0_i32_0 = arith.constant 0 : i32
    return %c0_i32, %arg0 : i32, i32
  }
}

</mosaic_0001>

<llo_original>
// kernel: least_squares_forward.1
$region0: #{least_squares_forward.1}
  #allocation0 [shape = 'u32[]', space=smem, size = 0x4, offset = 0x4, fixed_abs, tag = 'smem constant byte address 0x4 - core index']
  #allocation1 [shape = 'u32[144,128]{1,0:T(1,128)}', space=vmem, size = 0x12000, scoped, tag = 'internal scratch']
  #allocation2 [shape = 'f32[1,1]{1,0:T(1,128)S(6)}', space=smem, size = 0x200, scoped, tag = 'scoped memory for least_squares_forward.1']
  %s0 = inlined_call_operand.vmem [shape: f32[32,128], index: 0, kind: input, shape index: {}]
  %s1 = inlined_call_operand.vmem [shape: f32[1024,32], index: 1, kind: input, shape index: {}]
  %s2 = inlined_call_operand.vmem [shape: f32[1024,1], index: 2, kind: input, shape index: {}]
  %s3 = inlined_call_operand.<no memory space> [shape: f32[1,1], index: 3, kind: input, shape index: {}]
  %s4 = inlined_call_operand.vmem [shape: f32[1,128], index: 4, kind: output, shape index: {}]
  %s5 = sld [smem:[#allocation0]]
  $region26: #{least_squares_forward.1} parent=0
    _
  %s7 = ssub.s32 1, %s5
  %s8 = scalar_select 0, %s7, %s5
  %9 = sst [smem:[#allocation2]] %s3
  // Predicated region
  $region2: #{least_squares_forward.1} parent=0 // pred_check
    _
  $region3: #{least_squares_forward.1} parent=0 // pred_check_branch
    %11 = sbr.rel (0) target = $region5
  $region4: #{least_squares_forward.1} parent=0 // pred_region
    _
  $region5: #{least_squares_forward.1} parent=0 // pred_fallthru
    _
  // Predicated region
  $region6: #{least_squares_forward.1} parent=0 // pred_check
    _
  $region7: #{least_squares_forward.1} parent=0 // pred_check_branch
    %13 = sbr.rel (0) target = $region9
  $region8: #{least_squares_forward.1} parent=0 // pred_region
    _
  $region9: #{least_squares_forward.1} parent=0 // pred_fallthru
    _
  // Predicated region
  $region10: #{least_squares_forward.1} parent=0 // pred_check
    _
  $region11: #{least_squares_forward.1} parent=0 // pred_check_branch
    %15 = sbr.rel (0) target = $region13
  $region12: #{least_squares_forward.1} parent=0 // pred_region
    _
  $region13: #{least_squares_forward.1} parent=0 // pred_fallthru
    _
  // Predicated region
  $region14: #{least_squares_forward.1} parent=0 // pred_check
    _
  $region15: #{least_squares_forward.1} parent=0 // pred_check_branch
    %17 = sbr.rel (0) target = $region17
  $region16: #{least_squares_forward.1} parent=0 // pred_region
    _
  $region17: #{least_squares_forward.1} parent=0 // pred_fallthru
    _
  %v18 = vld [vmem:[%s0] sm:$0xff]
  %v19 = vld [vmem:[%s0 + $0x8] sm:$0xff]
  %v20 = vld [vmem:[%s0 + $0x10] sm:$0xff]
  %v21 = vld [vmem:[%s0 + $0x18] sm:$0xff]
  %v22 = vld [vmem:[%s1] sm:$0xff]
  %v23 = vld [vmem:[%s1 + $0x8] sm:$0xff]
  %v24 = vld [vmem:[%s1 + $0x10] sm:$0xff]
  %v25 = vld [vmem:[%s1 + $0x18] sm:$0xff]
  %v26 = vld [vmem:[%s1 + $0x20] sm:$0xff]
  %v27 = vld [vmem:[%s1 + $0x28] sm:$0xff]
  %v28 = vld [vmem:[%s1 + $0x30] sm:$0xff]
  %v29 = vld [vmem:[%s1 + $0x38] sm:$0xff]
  %v30 = vld [vmem:[%s1 + $0x40] sm:$0xff]
  %v31 = vld [vmem:[%s1 + $0x48] sm:$0xff]
  %v32 = vld [vmem:[%s1 + $0x50] sm:$0xff]
  %v33 = vld [vmem:[%s1 + $0x58] sm:$0xff]
  %v34 = vld [vmem:[%s1 + $0x60] sm:$0xff]
  %v35 = vld [vmem:[%s1 + $0x68] sm:$0xff]
  %v36 = vld [vmem:[%s1 + $0x70] sm:$0xff]
  %v37 = vld [vmem:[%s1 + $0x78] sm:$0xff]
  %v38 = vld [vmem:[%s1 + $0x80] sm:$0xff]
  %v39 = vld [vmem:[%s1 + $0x88] sm:$0xff]
  %v40 = vld [vmem:[%s1 + $0x90] sm:$0xff]
  %v41 = vld [vmem:[%s1 + $0x98] sm:$0xff]
  %v42 = vld [vmem:[%s1 + $0xa0] sm:$0xff]
  %v43 = vld [vmem:[%s1 + $0xa8] sm:$0xff]
  %v44 = vld [vmem:[%s1 + $0xb0] sm:$0xff]
  %v45 = vld [vmem:[%s1 + $0xb8] sm:$0xff]
  %v46 = vld [vmem:[%s1 + $0xc0] sm:$0xff]
  %v47 = vld [vmem:[%s1 + $0xc8] sm:$0xff]
  %v48 = vld [vmem:[%s1 + $0xd0] sm:$0xff]
  %v49 = vld [vmem:[%s1 + $0xd8] sm:$0xff]
  %v50 = vld [vmem:[%s1 + $0xe0] sm:$0xff]
  %v51 = vld [vmem:[%s1 + $0xe8] sm:$0xff]
  %v52 = vld [vmem:[%s1 + $0xf0] sm:$0xff]
  %v53 = vld [vmem:[%s1 + $0xf8] sm:$0xff]
  %vm54 = vcmask 261120
  %v56 = vsel %vm54, %v22, 0
  %v59 = vsel %vm54, %v23, 0
  %v62 = vsel %vm54, %v24, 0
  %v65 = vsel %vm54, %v25, 0
  %v68 = vsel %vm54, %v26, 0
  %v71 = vsel %vm54, %v27, 0
  %v74 = vsel %vm54, %v28, 0
  %v77 = vsel %vm54, %v29, 0
  %v80 = vsel %vm54, %v30, 0
  %v83 = vsel %vm54, %v31, 0
  %v86 = vsel %vm54, %v32, 0
  %v89 = vsel %vm54, %v33, 0
  %v92 = vsel %vm54, %v34, 0
  %v95 = vsel %vm54, %v35, 0
  %v98 = vsel %vm54, %v36, 0
  %v101 = vsel %vm54, %v37, 0
  %v104 = vsel %vm54, %v38, 0
  %v107 = vsel %vm54, %v39, 0
  %v110 = vsel %vm54, %v40, 0
  %v113 = vsel %vm54, %v41, 0
  %v116 = vsel %vm54, %v42, 0
  %v119 = vsel %vm54, %v43, 0
  %v122 = vsel %vm54, %v44, 0
  %v125 = vsel %vm54, %v45, 0
  %v128 = vsel %vm54, %v46, 0
  %v131 = vsel %vm54, %v47, 0
  %v134 = vsel %vm54, %v48, 0
  %v137 = vsel %vm54, %v49, 0
  %v140 = vsel %vm54, %v50, 0
  %v143 = vsel %vm54, %v51, 0
  %v146 = vsel %vm54, %v52, 0
  %v149 = vsel %vm54, %v53, 0
  %151 = vmatprep.subr.mxu0 0.0
  %152 = vmatpush1.msra.mxu0 %v18
  %153 = vmatprep.subr.mxu0 0.0
  %154 = vmatpush1.msra.mxu0 %v19
  %155 = vmatprep.subr.mxu0 0.0
  %156 = vmatpush1.msra.mxu0 %v20
  %157 = vmatprep.subr.mxu0 0.0
  %158 = vmatpush1.msra.mxu0 %v21
  %159 = vmatprep.subr.mxu0 0.0
  %160 = vmatpush1.msra.mxu0 0.0
  %161 = vmatprep.subr.mxu0 0.0
  %162 = vmatpush1.msra.mxu0 0.0
  %163 = vmatprep.subr.mxu0 0.0
  %164 = vmatpush1.msra.mxu0 0.0
  %165 = vmatprep.subr.mxu0 0.0
  %166 = vmatpush1.msra.mxu0 0.0
  %167 = vmatprep.subr.mxu0 0.0
  %168 = vmatpush1.msra.mxu0 0.0
  %169 = vmatprep.subr.mxu0 0.0
  %170 = vmatpush1.msra.mxu0 0.0
  %171 = vmatprep.subr.mxu0 0.0
  %172 = vmatpush1.msra.mxu0 0.0
  %173 = vmatprep.subr.mxu0 0.0
  %174 = vmatpush1.msra.mxu0 0.0
  %175 = vmatprep.subr.mxu0 0.0
  %176 = vmatpush1.msra.mxu0 0.0
  %177 = vmatprep.subr.mxu0 0.0
  %178 = vmatpush1.msra.mxu0 0.0
  %179 = vmatprep.subr.mxu0 0.0
  %180 = vmatpush1.msra.mxu0 0.0
  %181 = vmatprep.subr.mxu0 0.0
  %182 = vmatpush1.msra.mxu0 0.0
  %183 = vmatprep.subr.mxu0 0.0
  %184 = vmatpush1.msra.mxu0 0.0
  %185 = vmatprep.subr.mxu0 0.0
  %186 = vmatpush1.msra.mxu0 0.0
  %187 = vmatprep.subr.mxu0 0.0
  %188 = vmatpush1.msra.mxu0 0.0
  %189 = vmatprep.subr.mxu0 0.0
  %190 = vmatpush1.msra.mxu0 0.0
  %191 = vmatprep.subr.mxu0 0.0
  %192 = vmatpush1.msra.mxu0 0.0
  %193 = vmatprep.subr.mxu0 0.0
  %194 = vmatpush1.msra.mxu0 0.0
  %195 = vmatprep.subr.mxu0 0.0
  %196 = vmatpush1.msra.mxu0 0.0
  %197 = vmatprep.subr.mxu0 0.0
  %198 = vmatpush1.msra.mxu0 0.0
  %199 = vmatprep.subr.mxu0 0.0
  %200 = vmatpush1.msra.mxu0 0.0
  %201 = vmatprep.subr.mxu0 0.0
  %202 = vmatpush1.msra.mxu0 0.0
  %203 = vmatprep.subr.mxu0 0.0
  %204 = vmatpush1.msra.mxu0 0.0
  %205 = vmatprep.subr.mxu0 0.0
  %206 = vmatpush1.msra.mxu0 0.0
  %207 = vmatprep.subr.mxu0 0.0
  %208 = vmatpush1.msra.mxu0 0.0
  %209 = vmatprep.subr.mxu0 0.0
  %210 = vmatpush1.msra.mxu0 0.0
  %211 = vmatprep.subr.mxu0 0.0
  %212 = vmatpush1.msra.mxu0 0.0
  %213 = vmatprep.subr.mxu0 0.0
  %214 = vmatpush1.msra.mxu0 0.0
  %215 = vmatprep.mubr.f32.mxu0 0.0
  %216 = vmatmul.mubr.f32.gmra.mrb[0].mxu0 %v56
  %v217 = vpop.f32.mrb[0].mxu0
  %v218 = vadd.f32 0.0, %v217
  %v219 = vpop.f32.mrb[0].mxu0
  %220 = vmatprep.mubr.f32.mxu0 0.0
  %221 = vmatmul.mubr.f32.gmra.mrb[0].mxu0 %v59
  %v222 = vpop.f32.mrb[0].mxu0
  %v223 = vadd.f32 0.0, %v222
  %v224 = vpop.f32.mrb[0].mxu0
  %225 = vmatprep.mubr.f32.mxu0 0.0
  %226 = vmatmul.mubr.f32.gmra.mrb[0].mxu0 %v62
  %v227 = vpop.f32.mrb[0].mxu0
  %v228 = vadd.f32 0.0, %v227
  %v229 = vpop.f32.mrb[0].mxu0
  %230 = vmatprep.mubr.f32.mxu0 0.0
  %231 = vmatmul.mubr.f32.gmra.mrb[0].mxu0 %v65
  %v232 = vpop.f32.mrb[0].mxu0
  %v233 = vadd.f32 0.0, %v232
  %v234 = vpop.f32.mrb[0].mxu0
  %235 = vmatprep.mubr.f32.mxu0 0.0
  %236 = vmatmul.mubr.f32.gmra.mrb[0].mxu0 %v68
  %v237 = vpop.f32.mrb[0].mxu0
  %v238 = vadd.f32 0.0, %v237
  %v239 = vpop.f32.mrb[0].mxu0
  %240 = vmatprep.mubr.f32.mxu0 0.0
  %241 = vmatmul.mubr.f32.gmra.mrb[0].mxu0 %v71
  %v242 = vpop.f32.mrb[0].mxu0
  %v243 = vadd.f32 0.0, %v242
  %v244 = vpop.f32.mrb[0].mxu0
  %245 = vmatprep.mubr.f32.mxu0 0.0
  %246 = vmatmul.mubr.f32.gmra.mrb[0].mxu0 %v74
  %v247 = vpop.f32.mrb[0].mxu0
  %v248 = vadd.f32 0.0, %v247
  %v249 = vpop.f32.mrb[0].mxu0
  %250 = vmatprep.mubr.f32.mxu0 0.0
  %251 = vmatmul.mubr.f32.gmra.mrb[0].mxu0 %v77
  %v252 = vpop.f32.mrb[0].mxu0
  %v253 = vadd.f32 0.0, %v252
  %v254 = vpop.f32.mrb[0].mxu0
  %255 = vmatprep.mubr.f32.mxu0 0.0
  %256 = vmatmul.mubr.f32.gmra.mrb[0].mxu0 %v80
  %v257 = vpop.f32.mrb[0].mxu0
  %v258 = vadd.f32 0.0, %v257
  %v259 = vpop.f32.mrb[0].mxu0
  %260 = vmatprep.mubr.f32.mxu0 0.0
  %261 = vmatmul.mubr.f32.gmra.mrb[0].mxu0 %v83
  %v262 = vpop.f32.mrb[0].mxu0
  %v263 = vadd.f32 0.0, %v262
  %v264 = vpop.f32.mrb[0].mxu0
  %265 = vmatprep.mubr.f32.mxu0 0.0
  %266 = vmatmul.mubr.f32.gmra.mrb[0].mxu0 %v86
  %v267 = vpop.f32.mrb[0].mxu0
  %v268 = vadd.f32 0.0, %v267
  %v269 = vpop.f32.mrb[0].mxu0
  %270 = vmatprep.mubr.f32.mxu0 0.0
  %271 = vmatmul.mubr.f32.gmra.mrb[0].mxu0 %v89
  %v272 = vpop.f32.mrb[0].mxu0
  %v273 = vadd.f32 0.0, %v272
  %v274 = vpop.f32.mrb[0].mxu0
  %275 = vmatprep.mubr.f32.mxu0 0.0
  %276 = vmatmul.mubr.f32.gmra.mrb[0].mxu0 %v92
  %v277 = vpop.f32.mrb[0].mxu0
  %v278 = vadd.f32 0.0, %v277
  %v279 = vpop.f32.mrb[0].mxu0
  %280 = vmatprep.mubr.f32.mxu0 0.0
  %281 = vmatmul.mubr.f32.gmra.mrb[0].mxu0 %v95
  %v282 = vpop.f32.mrb[0].mxu0
  %v283 = vadd.f32 0.0, %v282
  %v284 = vpop.f32.mrb[0].mxu0
  %285 = vmatprep.mubr.f32.mxu0 0.0
  %286 = vmatmul.mubr.f32.gmra.mrb[0].mxu0 %v98
  %v287 = vpop.f32.mrb[0].mxu0
  %v288 = vadd.f32 0.0, %v287
  %v289 = vpop.f32.mrb[0].mxu0
  %290 = vmatprep.mubr.f32.mxu0 0.0
  %291 = vmatmul.mubr.f32.gmra.mrb[0].mxu0 %v101
  %v292 = vpop.f32.mrb[0].mxu0
  %v293 = vadd.f32 0.0, %v292
  %v294 = vpop.f32.mrb[0].mxu0
  %295 = vmatprep.mubr.f32.mxu0 0.0
  %296 = vmatmul.mubr.f32.gmra.mrb[0].mxu0 %v104
  %v297 = vpop.f32.mrb[0].mxu0
  %v298 = vadd.f32 0.0, %v297
  %v299 = vpop.f32.mrb[0].mxu0
  %300 = vmatprep.mubr.f32.mxu0 0.0
  %301 = vmatmul.mubr.f32.gmra.mrb[0].mxu0 %v107
  %v302 = vpop.f32.mrb[0].mxu0
  %v303 = vadd.f32 0.0, %v302
  %v304 = vpop.f32.mrb[0].mxu0
  %305 = vmatprep.mubr.f32.mxu0 0.0
  %306 = vmatmul.mubr.f32.gmra.mrb[0].mxu0 %v110
  %v307 = vpop.f32.mrb[0].mxu0
  %v308 = vadd.f32 0.0, %v307
  %v309 = vpop.f32.mrb[0].mxu0
  %310 = vmatprep.mubr.f32.mxu0 0.0
  %311 = vmatmul.mubr.f32.gmra.mrb[0].mxu0 %v113
  %v312 = vpop.f32.mrb[0].mxu0
  %v313 = vadd.f32 0.0, %v312
  %v314 = vpop.f32.mrb[0].mxu0
  %315 = vmatprep.mubr.f32.mxu0 0.0
  %316 = vmatmul.mubr.f32.gmra.mrb[0].mxu0 %v116
  %v317 = vpop.f32.mrb[0].mxu0
  %v318 = vadd.f32 0.0, %v317
  %v319 = vpop.f32.mrb[0].mxu0
  %320 = vmatprep.mubr.f32.mxu0 0.0
  %321 = vmatmul.mubr.f32.gmra.mrb[0].mxu0 %v119
  %v322 = vpop.f32.mrb[0].mxu0
  %v323 = vadd.f32 0.0, %v322
  %v324 = vpop.f32.mrb[0].mxu0
  %325 = vmatprep.mubr.f32.mxu0 0.0
  %326 = vmatmul.mubr.f32.gmra.mrb[0].mxu0 %v122
  %v327 = vpop.f32.mrb[0].mxu0
  %v328 = vadd.f32 0.0, %v327
  %v329 = vpop.f32.mrb[0].mxu0
  %330 = vmatprep.mubr.f32.mxu0 0.0
  %331 = vmatmul.mubr.f32.gmra.mrb[0].mxu0 %v125
  %v332 = vpop.f32.mrb[0].mxu0
  %v333 = vadd.f32 0.0, %v332
  %v334 = vpop.f32.mrb[0].mxu0
  %335 = vmatprep.mubr.f32.mxu0 0.0
  %336 = vmatmul.mubr.f32.gmra.mrb[0].mxu0 %v128
  %v337 = vpop.f32.mrb[0].mxu0
  %v338 = vadd.f32 0.0, %v337
  %v339 = vpop.f32.mrb[0].mxu0
  %340 = vmatprep.mubr.f32.mxu0 0.0
  %341 = vmatmul.mubr.f32.gmra.mrb[0].mxu0 %v131
  %v342 = vpop.f32.mrb[0].mxu0
  %v343 = vadd.f32 0.0, %v342
  %v344 = vpop.f32.mrb[0].mxu0
  %345 = vmatprep.mubr.f32.mxu0 0.0
  %346 = vmatmul.mubr.f32.gmra.mrb[0].mxu0 %v134
  %v347 = vpop.f32.mrb[0].mxu0
  %v348 = vadd.f32 0.0, %v347
  %v349 = vpop.f32.mrb[0].mxu0
  %350 = vmatprep.mubr.f32.mxu0 0.0
  %351 = vmatmul.mubr.f32.gmra.mrb[0].mxu0 %v137
  %v352 = vpop.f32.mrb[0].mxu0
  %v353 = vadd.f32 0.0, %v352
  %v354 = vpop.f32.mrb[0].mxu0
  %355 = vmatprep.mubr.f32.mxu0 0.0
  %356 = vmatmul.mubr.f32.gmra.mrb[0].mxu0 %v140
  %v357 = vpop.f32.mrb[0].mxu0
  %v358 = vadd.f32 0.0, %v357
  %v359 = vpop.f32.mrb[0].mxu0
  %360 = vmatprep.mubr.f32.mxu0 0.0
  %361 = vmatmul.mubr.f32.gmra.mrb[0].mxu0 %v143
  %v362 = vpop.f32.mrb[0].mxu0
  %v363 = vadd.f32 0.0, %v362
  %v364 = vpop.f32.mrb[0].mxu0
  %365 = vmatprep.mubr.f32.mxu0 0.0
  %366 = vmatmul.mubr.f32.gmra.mrb[0].mxu0 %v146
  %v367 = vpop.f32.mrb[0].mxu0
  %v368 = vadd.f32 0.0, %v367
  %v369 = vpop.f32.mrb[0].mxu0
  %370 = vmatprep.mubr.f32.mxu0 0.0
  %371 = vmatmul.mubr.f32.gmra.mrb[0].mxu0 %v149
  %v372 = vpop.f32.mrb[0].mxu0
  %v373 = vadd.f32 0.0, %v372
  %v374 = vpop.f32.mrb[0].mxu0
  %375 = vdwg.mxu0
  %v376 = vtanh.pop %v218
  %v377 = vtanh.pop %v223
  %v378 = vtanh.pop %v228
  %v379 = vtanh.pop %v233
  %v380 = vtanh.pop %v238
  %v381 = vtanh.pop %v243
  %v382 = vtanh.pop %v248
  %v383 = vtanh.pop %v253
  %v384 = vtanh.pop %v258
  %v385 = vtanh.pop %v263
  %v386 = vtanh.pop %v268
  %v387 = vtanh.pop %v273
  %v388 = vtanh.pop %v278
  %v389 = vtanh.pop %v283
  %v390 = vtanh.pop %v288
  %v391 = vtanh.pop %v293
  %v392 = vtanh.pop %v298
  %v393 = vtanh.pop %v303
  %v394 = vtanh.pop %v308
  %v395 = vtanh.pop %v313
  %v396 = vtanh.pop %v318
  %v397 = vtanh.pop %v323
  %v398 = vtanh.pop %v328
  %v399 = vtanh.pop %v333
  %v400 = vtanh.pop %v338
  %v401 = vtanh.pop %v343
  %v402 = vtanh.pop %v348
  %v403 = vtanh.pop %v353
  %v404 = vtanh.pop %v358
  %v405 = vtanh.pop %v363
  %v406 = vtanh.pop %v368
  %v407 = vtanh.pop %v373
  %v408 = vld [vmem:[%s2] sm:$0xff]
  %v409 = vld [vmem:[%s2 + $0x8] sm:$0xff]
  %v410 = vld [vmem:[%s2 + $0x10] sm:$0xff]
  %v411 = vld [vmem:[%s2 + $0x18] sm:$0xff]
  %v412 = vld [vmem:[%s2 + $0x20] sm:$0xff]
  %v413 = vld [vmem:[%s2 + $0x28] sm:$0xff]
  %v414 = vld [vmem:[%s2 + $0x30] sm:$0xff]
  %v415 = vld [vmem:[%s2 + $0x38] sm:$0xff]
  %v416 = vld [vmem:[%s2 + $0x40] sm:$0xff]
  %v417 = vld [vmem:[%s2 + $0x48] sm:$0xff]
  %v418 = vld [vmem:[%s2 + $0x50] sm:$0xff]
  %v419 = vld [vmem:[%s2 + $0x58] sm:$0xff]
  %v420 = vld [vmem:[%s2 + $0x60] sm:$0xff]
  %v421 = vld [vmem:[%s2 + $0x68] sm:$0xff]
  %v422 = vld [vmem:[%s2 + $0x70] sm:$0xff]
  %v423 = vld [vmem:[%s2 + $0x78] sm:$0xff]
  %v424 = vld [vmem:[%s2 + $0x80] sm:$0xff]
  %v425 = vld [vmem:[%s2 + $0x88] sm:$0xff]
  %v426 = vld [vmem:[%s2 + $0x90] sm:$0xff]
  %v427 = vld [vmem:[%s2 + $0x98] sm:$0xff]
  %v428 = vld [vmem:[%s2 + $0xa0] sm:$0xff]
  %v429 = vld [vmem:[%s2 + $0xa8] sm:$0xff]
  %v430 = vld [vmem:[%s2 + $0xb0] sm:$0xff]
  %v431 = vld [vmem:[%s2 + $0xb8] sm:$0xff]
  %v432 = vld [vmem:[%s2 + $0xc0] sm:$0xff]
  %v433 = vld [vmem:[%s2 + $0xc8] sm:$0xff]
  %v434 = vld [vmem:[%s2 + $0xd0] sm:$0xff]
  %v435 = vld [vmem:[%s2 + $0xd8] sm:$0xff]
  %v436 = vld [vmem:[%s2 + $0xe0] sm:$0xff]
  %v437 = vld [vmem:[%s2 + $0xe8] sm:$0xff]
  %v438 = vld [vmem:[%s2 + $0xf0] sm:$0xff]
  %v439 = vld [vmem:[%s2 + $0xf8] sm:$0xff]
  %441 = vset.pattern.permute.xlu0 0
  %442 = vperm.xlu0 %441, %v408
  %v443 = vpop.permute.xlu0 %442
  %446 = vset.pattern.permute.xlu0 0
  %447 = vperm.xlu0 %446, %v409
  %v448 = vpop.permute.xlu0 %447
  %451 = vset.pattern.permute.xlu0 0
  %452 = vperm.xlu0 %451, %v410
  %v453 = vpop.permute.xlu0 %452
  %456 = vset.pattern.permute.xlu0 0
  %457 = vperm.xlu0 %456, %v411
  %v458 = vpop.permute.xlu0 %457
  %461 = vset.pattern.permute.xlu0 0
  %462 = vperm.xlu0 %461, %v412
  %v463 = vpop.permute.xlu0 %462
  %466 = vset.pattern.permute.xlu0 0
  %467 = vperm.xlu0 %466, %v413
  %v468 = vpop.permute.xlu0 %467
  %471 = vset.pattern.permute.xlu0 0
  %472 = vperm.xlu0 %471, %v414
  %v473 = vpop.permute.xlu0 %472
  %476 = vset.pattern.permute.xlu0 0
  %477 = vperm.xlu0 %476, %v415
  %v478 = vpop.permute.xlu0 %477
  %481 = vset.pattern.permute.xlu0 0
  %482 = vperm.xlu0 %481, %v416
  %v483 = vpop.permute.xlu0 %482
  %486 = vset.pattern.permute.xlu0 0
  %487 = vperm.xlu0 %486, %v417
  %v488 = vpop.permute.xlu0 %487
  %491 = vset.pattern.permute.xlu0 0
  %492 = vperm.xlu0 %491, %v418
  %v493 = vpop.permute.xlu0 %492
  %496 = vset.pattern.permute.xlu0 0
  %497 = vperm.xlu0 %496, %v419
  %v498 = vpop.permute.xlu0 %497
  %501 = vset.pattern.permute.xlu0 0
  %502 = vperm.xlu0 %501, %v420
  %v503 = vpop.permute.xlu0 %502
  %506 = vset.pattern.permute.xlu0 0
  %507 = vperm.xlu0 %506, %v421
  %v508 = vpop.permute.xlu0 %507
  %511 = vset.pattern.permute.xlu0 0
  %512 = vperm.xlu0 %511, %v422
  %v513 = vpop.permute.xlu0 %512
  %516 = vset.pattern.permute.xlu0 0
  %517 = vperm.xlu0 %516, %v423
  %v518 = vpop.permute.xlu0 %517
  %521 = vset.pattern.permute.xlu0 0
  %522 = vperm.xlu0 %521, %v424
  %v523 = vpop.permute.xlu0 %522
  %526 = vset.pattern.permute.xlu0 0
  %527 = vperm.xlu0 %526, %v425
  %v528 = vpop.permute.xlu0 %527
  %531 = vset.pattern.permute.xlu0 0
  %532 = vperm.xlu0 %531, %v426
  %v533 = vpop.permute.xlu0 %532
  %536 = vset.pattern.permute.xlu0 0
  %537 = vperm.xlu0 %536, %v427
  %v538 = vpop.permute.xlu0 %537
  %541 = vset.pattern.permute.xlu0 0
  %542 = vperm.xlu0 %541, %v428
  %v543 = vpop.permute.xlu0 %542
  %546 = vset.pattern.permute.xlu0 0
  %547 = vperm.xlu0 %546, %v429
  %v548 = vpop.permute.xlu0 %547
  %551 = vset.pattern.permute.xlu0 0
  %552 = vperm.xlu0 %551, %v430
  %v553 = vpop.permute.xlu0 %552
  %556 = vset.pattern.permute.xlu0 0
  %557 = vperm.xlu0 %556, %v431
  %v558 = vpop.permute.xlu0 %557
  %561 = vset.pattern.permute.xlu0 0
  %562 = vperm.xlu0 %561, %v432
  %v563 = vpop.permute.xlu0 %562
  %566 = vset.pattern.permute.xlu0 0
  %567 = vperm.xlu0 %566, %v433
  %v568 = vpop.permute.xlu0 %567
  %571 = vset.pattern.permute.xlu0 0
  %572 = vperm.xlu0 %571, %v434
  %v573 = vpop.permute.xlu0 %572
  %576 = vset.pattern.permute.xlu0 0
  %577 = vperm.xlu0 %576, %v435
  %v578 = vpop.permute.xlu0 %577
  %581 = vset.pattern.permute.xlu0 0
  %582 = vperm.xlu0 %581, %v436
  %v583 = vpop.permute.xlu0 %582
  %586 = vset.pattern.permute.xlu0 0
  %587 = vperm.xlu0 %586, %v437
  %v588 = vpop.permute.xlu0 %587
  %591 = vset.pattern.permute.xlu0 0
  %592 = vperm.xlu0 %591, %v438
  %v593 = vpop.permute.xlu0 %592
  %596 = vset.pattern.permute.xlu0 0
  %597 = vperm.xlu0 %596, %v439
  %v598 = vpop.permute.xlu0 %597
  %v600 = vmul.f32 %v376, %v443
  %v601 = vmul.f32 %v377, %v448
  %v602 = vmul.f32 %v378, %v453
  %v603 = vmul.f32 %v379, %v458
  %v604 = vmul.f32 %v380, %v463
  %v605 = vmul.f32 %v381, %v468
  %v606 = vmul.f32 %v382, %v473
  %v607 = vmul.f32 %v383, %v478
  %v608 = vmul.f32 %v384, %v483
  %v609 = vmul.f32 %v385, %v488
  %v610 = vmul.f32 %v386, %v493
  %v611 = vmul.f32 %v387, %v498
  %v612 = vmul.f32 %v388, %v503
  %v613 = vmul.f32 %v389, %v508
  %v614 = vmul.f32 %v390, %v513
  %v615 = vmul.f32 %v391, %v518
  %v616 = vmul.f32 %v392, %v523
  %v617 = vmul.f32 %v393, %v528
  %v618 = vmul.f32 %v394, %v533
  %v619 = vmul.f32 %v395, %v538
  %v620 = vmul.f32 %v396, %v543
  %v621 = vmul.f32 %v397, %v548
  %v622 = vmul.f32 %v398, %v553
  %v623 = vmul.f32 %v399, %v558
  %v624 = vmul.f32 %v400, %v563
  %v625 = vmul.f32 %v401, %v568
  %v626 = vmul.f32 %v402, %v573
  %v627 = vmul.f32 %v403, %v578
  %v628 = vmul.f32 %v404, %v583
  %v629 = vmul.f32 %v405, %v588
  %v630 = vmul.f32 %v406, %v593
  %v631 = vmul.f32 %v407, %v598
  %v632 = vadd.f32 %v600, 0.0
  %v633 = vadd.f32 %v601, 0.0
  %v634 = vadd.f32 %v602, 0.0
  %v635 = vadd.f32 %v603, 0.0
  %v636 = vadd.f32 %v604, 0.0
  %v637 = vadd.f32 %v605, 0.0
  %v638 = vadd.f32 %v606, 0.0
  %v639 = vadd.f32 %v607, 0.0
  %v640 = vadd.f32 %v608, 0.0
  %v641 = vadd.f32 %v609, 0.0
  %v642 = vadd.f32 %v610, 0.0
  %v643 = vadd.f32 %v611, 0.0
  %v644 = vadd.f32 %v612, 0.0
  %v645 = vadd.f32 %v613, 0.0
  %v646 = vadd.f32 %v614, 0.0
  %v647 = vadd.f32 %v615, 0.0
  %v648 = vadd.f32 %v616, 0.0
  %v649 = vadd.f32 %v617, 0.0
  %v650 = vadd.f32 %v618, 0.0
  %v651 = vadd.f32 %v619, 0.0
  %v652 = vadd.f32 %v620, 0.0
  %v653 = vadd.f32 %v621, 0.0
  %v654 = vadd.f32 %v622, 0.0
  %v655 = vadd.f32 %v623, 0.0
  %v656 = vadd.f32 %v624, 0.0
  %v657 = vadd.f32 %v625, 0.0
  %v658 = vadd.f32 %v626, 0.0
  %v659 = vadd.f32 %v627, 0.0
  %v660 = vadd.f32 %v628, 0.0
  %v661 = vadd.f32 %v629, 0.0
  %v662 = vadd.f32 %v630, 0.0
  %v663 = vadd.f32 %v631, 0.0
  %v664 = vld [vmem:[%s1 + $0x100] sm:$0xff]
  %v665 = vld [vmem:[%s1 + $0x108] sm:$0xff]
  %v666 = vld [vmem:[%s1 + $0x110] sm:$0xff]
  %v667 = vld [vmem:[%s1 + $0x118] sm:$0xff]
  %v668 = vld [vmem:[%s1 + $0x120] sm:$0xff]
  %v669 = vld [vmem:[%s1 + $0x128] sm:$0xff]
  %v670 = vld [vmem:[%s1 + $0x130] sm:$0xff]
  %v671 = vld [vmem:[%s1 + $0x138] sm:$0xff]
  %v672 = vld [vmem:[%s1 + $0x140] sm:$0xff]
  %v673 = vld [vmem:[%s1 + $0x148] sm:$0xff]
  %v674 = vld [vmem:[%s1 + $0x150] sm:$0xff]
  %v675 = vld [vmem:[%s1 + $0x158] sm:$0xff]
  %v676 = vld [vmem:[%s1 + $0x160] sm:$0xff]
  %v677 = vld [vmem:[%s1 + $0x168] sm:$0xff]
  %v678 = vld [vmem:[%s1 + $0x170] sm:$0xff]
  %v679 = vld [vmem:[%s1 + $0x178] sm:$0xff]
  %v680 = vld [vmem:[%s1 + $0x180] sm:$0xff]
  %v681 = vld [vmem:[%s1 + $0x188] sm:$0xff]
  %v682 = vld [vmem:[%s1 + $0x190] sm:$0xff]
  %v683 = vld [vmem:[%s1 + $0x198] sm:$0xff]
  %v684 = vld [vmem:[%s1 + $0x1a0] sm:$0xff]
  %v685 = vld [vmem:[%s1 + $0x1a8] sm:$0xff]
  %v686 = vld [vmem:[%s1 + $0x1b0] sm:$0xff]
  %v687 = vld [vmem:[%s1 + $0x1b8] sm:$0xff]
  %v688 = vld [vmem:[%s1 + $0x1c0] sm:$0xff]
  %v689 = vld [vmem:[%s1 + $0x1c8] sm:$0xff]
  %v690 = vld [vmem:[%s1 + $0x1d0] sm:$0xff]
  %v691 = vld [vmem:[%s1 + $0x1d8] sm:$0xff]
  %v692 = vld [vmem:[%s1 + $0x1e0] sm:$0xff]
  %v693 = vld [vmem:[%s1 + $0x1e8] sm:$0xff]
  %v694 = vld [vmem:[%s1 + $0x1f0] sm:$0xff]
  %v695 = vld [vmem:[%s1 + $0x1f8] sm:$0xff]
  %v697 = vsel %vm54, %v664, 0
  %v700 = vsel %vm54, %v665, 0
  %v703 = vsel %vm54, %v666, 0
  %v706 = vsel %vm54, %v667, 0
  %v709 = vsel %vm54, %v668, 0
  %v712 = vsel %vm54, %v669, 0
  %v715 = vsel %vm54, %v670, 0
  %v718 = vsel %vm54, %v671, 0
  %v721 = vsel %vm54, %v672, 0
  %v724 = vsel %vm54, %v673, 0
  %v727 = vsel %vm54, %v674, 0
  %v730 = vsel %vm54, %v675, 0
  %v733 = vsel %vm54, %v676, 0
  %v736 = vsel %vm54, %v677, 0
  %v739 = vsel %vm54, %v678, 0
  %v742 = vsel %vm54, %v679, 0
  %v745 = vsel %vm54, %v680, 0
  %v748 = vsel %vm54, %v681, 0
  %v751 = vsel %vm54, %v682, 0
  %v754 = vsel %vm54, %v683, 0
  %v757 = vsel %vm54, %v684, 0
  %v760 = vsel %vm54, %v685, 0
  %v763 = vsel %vm54, %v686, 0
  %v766 = vsel %vm54, %v687, 0
  %v769 = vsel %vm54, %v688, 0
  %v772 = vsel %vm54, %v689, 0
  %v775 = vsel %vm54, %v690, 0
  %v778 = vsel %vm54, %v691, 0
  %v781 = vsel %vm54, %v692, 0
  %v784 = vsel %vm54, %v693, 0
  %v787 = vsel %vm54, %v694, 0
  %v790 = vsel %vm54, %v695, 0
  %792 = vmatprep.subr.mxu0 0.0
  %793 = vmatpush1.msra.mxu0 %v18
  %794 = vmatprep.subr.mxu0 0.0
  %795 = vmatpush1.msra.mxu0 %v19
  %796 = vmatprep.subr.mxu0 0.0
  %797 = vmatpush1.msra.mxu0 %v20
  %798 = vmatprep.subr.mxu0 0.0
  %799 = vmatpush1.msra.mxu0 %v21
  %800 = vmatprep.subr.mxu0 0.0
  %801 = vmatpush1.msra.mxu0 0.0
  %802 = vmatprep.subr.mxu0 0.0
  %803 = vmatpush1.msra.mxu0 0.0
  %804 = vmatprep.subr.mxu0 0.0
  %805 = vmatpush1.msra.mxu0 0.0
  %806 = vmatprep.subr.mxu0 0.0
  %807 = vmatpush1.msra.mxu0 0.0
  %808 = vmatprep.subr.mxu0 0.0
  %809 = vmatpush1.msra.mxu0 0.0
  %810 = vmatprep.subr.mxu0 0.0
  %811 = vmatpush1.msra.mxu0 0.0
  %812 = vmatprep.subr.mxu0 0.0
  %813 = vmatpush1.msra.mxu0 0.0
  %814 = vmatprep.subr.mxu0 0.0
  %815 = vmatpush1.msra.mxu0 0.0
  %816 = vmatprep.subr.mxu0 0.0
  %817 = vmatpush1.msra.mxu0 0.0
  %818 = vmatprep.subr.mxu0 0.0
  %819 = vmatpush1.msra.mxu0 0.0
  %820 = vmatprep.subr.mxu0 0.0
  %821 = vmatpush1.msra.mxu0 0.0
  %822 = vmatprep.subr.mxu0 0.0
  %823 = vmatpush1.msra.mxu0 0.0
  %824 = vmatprep.subr.mxu0 0.0
  %825 = vmatpush1.msra.mxu0 0.0
  %826 = vmatprep.subr.mxu0 0.0
  %827 = vmatpush1.msra.mxu0 0.0
  %828 = vmatprep.subr.mxu0 0.0
  %829 = vmatpush1.msra.mxu0 0.0
  %830 = vmatprep.subr.mxu0 0.0
  %831 = vmatpush1.msra.mxu0 0.0
  %832 = vmatprep.subr.mxu0 0.0
  %833 = vmatpush1.msra.mxu0 0.0
  %834 = vmatprep.subr.mxu0 0.0
  %835 = vmatpush1.msra.mxu0 0.0
  %836 = vmatprep.subr.mxu0 0.0
  %837 = vmatpush1.msra.mxu0 0.0
  %838 = vmatprep.subr.mxu0 0.0
  %839 = vmatpush1.msra.mxu0 0.0
  %840 = vmatprep.subr.mxu0 0.0
  %841 = vmatpush1.msra.mxu0 0.0
  %842 = vmatprep.subr.mxu0 0.0
  %843 = vmatpush1.msra.mxu0 0.0
  %844 = vmatprep.subr.mxu0 0.0
  %845 = vmatpush1.msra.mxu0 0.0
  %846 = vmatprep.subr.mxu0 0.0
  %847 = vmatpush1.msra.mxu0 0.0
  %848 = vmatprep.subr.mxu0 0.0
  %849 = vmatpush1.msra.mxu0 0.0
  %850 = vmatprep.subr.mxu0 0.0
  %851 = vmatpush1.msra.mxu0 0.0
  %852 = vmatprep.subr.mxu0 0.0
  %853 = vmatpush1.msra.mxu0 0.0
  %854 = vmatprep.subr.mxu0 0.0
  %855 = vmatpush1.msra.mxu0 0.0
  %856 = vmatprep.mubr.f32.mxu0 0.0
  %857 = vmatmul.mubr.f32.gmra.mrb[0].mxu0 %v697
  %v858 = vpop.f32.mrb[0].mxu0
  %v859 = vadd.f32 0.0, %v858
  %v860 = vpop.f32.mrb[0].mxu0
  %861 = vmatprep.mubr.f32.mxu0 0.0
  %862 = vmatmul.mubr.f32.gmra.mrb[0].mxu0 %v700
  %v863 = vpop.f32.mrb[0].mxu0
  %v864 = vadd.f32 0.0, %v863
  %v865 = vpop.f32.mrb[0].mxu0
  %866 = vmatprep.mubr.f32.mxu0 0.0
  %867 = vmatmul.mubr.f32.gmra.mrb[0].mxu0 %v703
  %v868 = vpop.f32.mrb[0].mxu0
  %v869 = vadd.f32 0.0, %v868
  %v870 = vpop.f32.mrb[0].mxu0
  %871 = vmatprep.mubr.f32.mxu0 0.0
  %872 = vmatmul.mubr.f32.gmra.mrb[0].mxu0 %v706
  %v873 = vpop.f32.mrb[0].mxu0
  %v874 = vadd.f32 0.0, %v873
  %v875 = vpop.f32.mrb[0].mxu0
  %876 = vmatprep.mubr.f32.mxu0 0.0
  %877 = vmatmul.mubr.f32.gmra.mrb[0].mxu0 %v709
  %v878 = vpop.f32.mrb[0].mxu0
  %v879 = vadd.f32 0.0, %v878
  %v880 = vpop.f32.mrb[0].mxu0
  %881 = vmatprep.mubr.f32.mxu0 0.0
  %882 = vmatmul.mubr.f32.gmra.mrb[0].mxu0 %v712
  %v883 = vpop.f32.mrb[0].mxu0
  %v884 = vadd.f32 0.0, %v883
  %v885 = vpop.f32.mrb[0].mxu0
  %886 = vmatprep.mubr.f32.mxu0 0.0
  %887 = vmatmul.mubr.f32.gmra.mrb[0].mxu0 %v715
  %v888 = vpop.f32.mrb[0].mxu0
  %v889 = vadd.f32 0.0, %v888
  %v890 = vpop.f32.mrb[0].mxu0
  %891 = vmatprep.mubr.f32.mxu0 0.0
  %892 = vmatmul.mubr.f32.gmra.mrb[0].mxu0 %v718
  %v893 = vpop.f32.mrb[0].mxu0
  %v894 = vadd.f32 0.0, %v893
  %v895 = vpop.f32.mrb[0].mxu0
  %896 = vmatprep.mubr.f32.mxu0 0.0
  %897 = vmatmul.mubr.f32.gmra.mrb[0].mxu0 %v721
  %v898 = vpop.f32.mrb[0].mxu0
  %v899 = vadd.f32 0.0, %v898
  %v900 = vpop.f32.mrb[0].mxu0
  %901 = vmatprep.mubr.f32.mxu0 0.0
  %902 = vmatmul.mubr.f32.gmra.mrb[0].mxu0 %v724
  %v903 = vpop.f32.mrb[0].mxu0
  %v904 = vadd.f32 0.0, %v903
  %v905 = vpop.f32.mrb[0].mxu0
  %906 = vmatprep.mubr.f32.mxu0 0.0
  %907 = vmatmul.mubr.f32.gmra.mrb[0].mxu0 %v727
  %v908 = vpop.f32.mrb[0].mxu0
  %v909 = vadd.f32 0.0, %v908
  %v910 = vpop.f32.mrb[0].mxu0
  %911 = vmatprep.mubr.f32.mxu0 0.0
  %912 = vmatmul.mubr.f32.gmra.mrb[0].mxu0 %v730
  %v913 = vpop.f32.mrb[0].mxu0
  %v914 = vadd.f32 0.0, %v913
  %v915 = vpop.f32.mrb[0].mxu0
  %916 = vmatprep.mubr.f32.mxu0 0.0
  %917 = vmatmul.mubr.f32.gmra.mrb[0].mxu0 %v733
  %v918 = vpop.f32.mrb[0].mxu0
  %v919 = vadd.f32 0.0, %v918
  %v920 = vpop.f32.mrb[0].mxu0
  %921 = vmatprep.mubr.f32.mxu0 0.0
  %922 = vmatmul.mubr.f32.gmra.mrb[0].mxu0 %v736
  %v923 = vpop.f32.mrb[0].mxu0
  %v924 = vadd.f32 0.0, %v923
  %v925 = vpop.f32.mrb[0].mxu0
  %926 = vmatprep.mubr.f32.mxu0 0.0
  %927 = vmatmul.mubr.f32.gmra.mrb[0].mxu0 %v739
  %v928 = vpop.f32.mrb[0].mxu0
  %v929 = vadd.f32 0.0, %v928
  %v930 = vpop.f32.mrb[0].mxu0
  %931 = vmatprep.mubr.f32.mxu0 0.0
  %932 = vmatmul.mubr.f32.gmra.mrb[0].mxu0 %v742
  %v933 = vpop.f32.mrb[0].mxu0
  %v934 = vadd.f32 0.0, %v933
  %v935 = vpop.f32.mrb[0].mxu0
  %936 = vmatprep.mubr.f32.mxu0 0.0
  %937 = vmatmul.mubr.f32.gmra.mrb[0].mxu0 %v745
  %v938 = vpop.f32.mrb[0].mxu0
  %v939 = vadd.f32 0.0, %v938
  %v940 = vpop.f32.mrb[0].mxu0
  %941 = vmatprep.mubr.f32.mxu0 0.0
  %942 = vmatmul.mubr.f32.gmra.mrb[0].mxu0 %v748
  %v943 = vpop.f32.mrb[0].mxu0
  %v944 = vadd.f32 0.0, %v943
  %v945 = vpop.f32.mrb[0].mxu0
  %946 = vmatprep.mubr.f32.mxu0 0.0
  %947 = vmatmul.mubr.f32.gmra.mrb[0].mxu0 %v751
  %v948 = vpop.f32.mrb[0].mxu0
  %v949 = vadd.f32 0.0, %v948
  %v950 = vpop.f32.mrb[0].mxu0
  %951 = vmatprep.mubr.f32.mxu0 0.0
  %952 = vmatmul.mubr.f32.gmra.mrb[0].mxu0 %v754
  %v953 = vpop.f32.mrb[0].mxu0
  %v954 = vadd.f32 0.0, %v953
  %v955 = vpop.f32.mrb[0].mxu0
  %956 = vmatprep.mubr.f32.mxu0 0.0
  %957 = vmatmul.mubr.f32.gmra.mrb[0].mxu0 %v757
  %v958 = vpop.f32.mrb[0].mxu0
  %v959 = vadd.f32 0.0, %v958
  %v960 = vpop.f32.mrb[0].mxu0
  %961 = vmatprep.mubr.f32.mxu0 0.0
  %962 = vmatmul.mubr.f32.gmra.mrb[0].mxu0 %v760
  %v963 = vpop.f32.mrb[0].mxu0
  %v964 = vadd.f32 0.0, %v963
  %v965 = vpop.f32.mrb[0].mxu0
  %966 = vmatprep.mubr.f32.mxu0 0.0
  %967 = vmatmul.mubr.f32.gmra.mrb[0].mxu0 %v763
  %v968 = vpop.f32.mrb[0].mxu0
  %v969 = vadd.f32 0.0, %v968
  %v970 = vpop.f32.mrb[0].mxu0
  %971 = vmatprep.mubr.f32.mxu0 0.0
  %972 = vmatmul.mubr.f32.gmra.mrb[0].mxu0 %v766
  %v973 = vpop.f32.mrb[0].mxu0
  %v974 = vadd.f32 0.0, %v973
  %v975 = vpop.f32.mrb[0].mxu0
  %976 = vmatprep.mubr.f32.mxu0 0.0
  %977 = vmatmul.mubr.f32.gmra.mrb[0].mxu0 %v769
  %v978 = vpop.f32.mrb[0].mxu0
  %v979 = vadd.f32 0.0, %v978
  %v980 = vpop.f32.mrb[0].mxu0
  %981 = vmatprep.mubr.f32.mxu0 0.0
  %982 = vmatmul.mubr.f32.gmra.mrb[0].mxu0 %v772
  %v983 = vpop.f32.mrb[0].mxu0
  %v984 = vadd.f32 0.0, %v983
  %v985 = vpop.f32.mrb[0].mxu0
  %986 = vmatprep.mubr.f32.mxu0 0.0
  %987 = vmatmul.mubr.f32.gmra.mrb[0].mxu0 %v775
  %v988 = vpop.f32.mrb[0].mxu0
  %v989 = vadd.f32 0.0, %v988
  %v990 = vpop.f32.mrb[0].mxu0
  %991 = vmatprep.mubr.f32.mxu0 0.0
  %992 = vmatmul.mubr.f32.gmra.mrb[0].mxu0 %v778
  %v993 = vpop.f32.mrb[0].mxu0
  %v994 = vadd.f32 0.0, %v993
  %v995 = vpop.f32.mrb[0].mxu0
  %996 = vmatprep.mubr.f32.mxu0 0.0
  %997 = vmatmul.mubr.f32.gmra.mrb[0].mxu0 %v781
  %v998 = vpop.f32.mrb[0].mxu0
  %v999 = vadd.f32 0.0, %v998
  %v1000 = vpop.f32.mrb[0].mxu0
  %1001 = vmatprep.mubr.f32.mxu0 0.0
  %1002 = vmatmul.mubr.f32.gmra.mrb[0].mxu0 %v784
  %v1003 = vpop.f32.mrb[0].mxu0
  %v1004 = vadd.f32 0.0, %v1003
  %v1005 = vpop.f32.mrb[0].mxu0
  %1006 = vmatprep.mubr.f32.mxu0 0.0
  %1007 = vmatmul.mubr.f32.gmra.mrb[0].mxu0 %v787
  %v1008 = vpop.f32.mrb[0].mxu0
  %v1009 = vadd.f32 0.0, %v1008
  %v1010 = vpop.f32.mrb[0].mxu0
  %1011 = vmatprep.mubr.f32.mxu0 0.0
  %1012 = vmatmul.mubr.f32.gmra.mrb[0].mxu0 %v790
  %v1013 = vpop.f32.mrb[0].mxu0
  %v1014 = vadd.f32 0.0, %v1013
  %v1015 = vpop.f32.mrb[0].mxu0
  %1016 = vdwg.mxu0
  %v1017 = vtanh.pop %v859
  %v1018 = vtanh.pop %v864
  %v1019 = vtanh.pop %v869
  %v1020 = vtanh.pop %v874
  %v1021 = vtanh.pop %v879
  %v1022 = vtanh.pop %v884
  %v1023 = vtanh.pop %v889
  %v1024 = vtanh.pop %v894
  %v1025 = vtanh.pop %v899
  %v1026 = vtanh.pop %v904
  %v1027 = vtanh.pop %v909
  %v1028 = vtanh.pop %v914
  %v1029 = vtanh.pop %v919
  %v1030 = vtanh.pop %v924
  %v1031 = vtanh.pop %v929
  %v1032 = vtanh.pop %v934
  %v1033 = vtanh.pop %v939
  %v1034 = vtanh.pop %v944
  %v1035 = vtanh.pop %v949
  %v1036 = vtanh.pop %v954
  %v1037 = vtanh.pop %v959
  %v1038 = vtanh.pop %v964
  %v1039 = vtanh.pop %v969
  %v1040 = vtanh.pop %v974
  %v1041 = vtanh.pop %v979
  %v1042 = vtanh.pop %v984
  %v1043 = vtanh.pop %v989
  %v1044 = vtanh.pop %v994
  %v1045 = vtanh.pop %v999
  %v1046 = vtanh.pop %v1004
  %v1047 = vtanh.pop %v1009
  %v1048 = vtanh.pop %v1014
  %v1049 = vld [vmem:[%s2 + $0x100] sm:$0xff]
  %v1050 = vld [vmem:[%s2 + $0x108] sm:$0xff]
  %v1051 = vld [vmem:[%s2 + $0x110] sm:$0xff]
  %v1052 = vld [vmem:[%s2 + $0x118] sm:$0xff]
  %v1053 = vld [vmem:[%s2 + $0x120] sm:$0xff]
  %v1054 = vld [vmem:[%s2 + $0x128] sm:$0xff]
  %v1055 = vld [vmem:[%s2 + $0x130] sm:$0xff]
  %v1056 = vld [vmem:[%s2 + $0x138] sm:$0xff]
  %v1057 = vld [vmem:[%s2 + $0x140] sm:$0xff]
  %v1058 = vld [vmem:[%s2 + $0x148] sm:$0xff]
  %v1059 = vld [vmem:[%s2 + $0x150] sm:$0xff]
  %v1060 = vld [vmem:[%s2 + $0x158] sm:$0xff]
  %v1061 = vld [vmem:[%s2 + $0x160] sm:$0xff]
  %v1062 = vld [vmem:[%s2 + $0x168] sm:$0xff]
  %v1063 = vld [vmem:[%s2 + $0x170] sm:$0xff]
  %v1064 = vld [vmem:[%s2 + $0x178] sm:$0xff]
  %v1065 = vld [vmem:[%s2 + $0x180] sm:$0xff]
  %v1066 = vld [vmem:[%s2 + $0x188] sm:$0xff]
  %v1067 = vld [vmem:[%s2 + $0x190] sm:$0xff]
  %v1068 = vld [vmem:[%s2 + $0x198] sm:$0xff]
  %v1069 = vld [vmem:[%s2 + $0x1a0] sm:$0xff]
  %v1070 = vld [vmem:[%s2 + $0x1a8] sm:$0xff]
  %v1071 = vld [vmem:[%s2 + $0x1b0] sm:$0xff]
  %v1072 = vld [vmem:[%s2 + $0x1b8] sm:$0xff]
  %v1073 = vld [vmem:[%s2 + $0x1c0] sm:$0xff]
  %v1074 = vld [vmem:[%s2 + $0x1c8] sm:$0xff]
  %v1075 = vld [vmem:[%s2 + $0x1d0] sm:$0xff]
  %v1076 = vld [vmem:[%s2 + $0x1d8] sm:$0xff]
  %v1077 = vld [vmem:[%s2 + $0x1e0] sm:$0xff]
  %v1078 = vld [vmem:[%s2 + $0x1e8] sm:$0xff]
  %v1079 = vld [vmem:[%s2 + $0x1f0] sm:$0xff]
  %v1080 = vld [vmem:[%s2 + $0x1f8] sm:$0xff]
  %1082 = vset.pattern.permute.xlu0 0
  %1083 = vperm.xlu0 %1082, %v1049
  %v1084 = vpop.permute.xlu0 %1083
  %1087 = vset.pattern.permute.xlu0 0
  %1088 = vperm.xlu0 %1087, %v1050
  %v1089 = vpop.permute.xlu0 %1088
  %1092 = vset.pattern.permute.xlu0 0
  %1093 = vperm.xlu0 %1092, %v1051
  %v1094 = vpop.permute.xlu0 %1093
  %1097 = vset.pattern.permute.xlu0 0
  %1098 = vperm.xlu0 %1097, %v1052
  %v1099 = vpop.permute.xlu0 %1098
  %1102 = vset.pattern.permute.xlu0 0
  %1103 = vperm.xlu0 %1102, %v1053
  %v1104 = vpop.permute.xlu0 %1103
  %1107 = vset.pattern.permute.xlu0 0
  %1108 = vperm.xlu0 %1107, %v1054
  %v1109 = vpop.permute.xlu0 %1108
  %1112 = vset.pattern.permute.xlu0 0
  %1113 = vperm.xlu0 %1112, %v1055
  %v1114 = vpop.permute.xlu0 %1113
  %1117 = vset.pattern.permute.xlu0 0
  %1118 = vperm.xlu0 %1117, %v1056
  %v1119 = vpop.permute.xlu0 %1118
  %1122 = vset.pattern.permute.xlu0 0
  %1123 = vperm.xlu0 %1122, %v1057
  %v1124 = vpop.permute.xlu0 %1123
  %1127 = vset.pattern.permute.xlu0 0
  %1128 = vperm.xlu0 %1127, %v1058
  %v1129 = vpop.permute.xlu0 %1128
  %1132 = vset.pattern.permute.xlu0 0
  %1133 = vperm.xlu0 %1132, %v1059
  %v1134 = vpop.permute.xlu0 %1133
  %1137 = vset.pattern.permute.xlu0 0
  %1138 = vperm.xlu0 %1137, %v1060
  %v1139 = vpop.permute.xlu0 %1138
  %1142 = vset.pattern.permute.xlu0 0
  %1143 = vperm.xlu0 %1142, %v1061
  %v1144 = vpop.permute.xlu0 %1143
  %1147 = vset.pattern.permute.xlu0 0
  %1148 = vperm.xlu0 %1147, %v1062
  %v1149 = vpop.permute.xlu0 %1148
  %1152 = vset.pattern.permute.xlu0 0
  %1153 = vperm.xlu0 %1152, %v1063
  %v1154 = vpop.permute.xlu0 %1153
  %1157 = vset.pattern.permute.xlu0 0
  %1158 = vperm.xlu0 %1157, %v1064
  %v1159 = vpop.permute.xlu0 %1158
  %1162 = vset.pattern.permute.xlu0 0
  %1163 = vperm.xlu0 %1162, %v1065
  %v1164 = vpop.permute.xlu0 %1163
  %1167 = vset.pattern.permute.xlu0 0
  %1168 = vperm.xlu0 %1167, %v1066
  %v1169 = vpop.permute.xlu0 %1168
  %1172 = vset.pattern.permute.xlu0 0
  %1173 = vperm.xlu0 %1172, %v1067
  %v1174 = vpop.permute.xlu0 %1173
  %1177 = vset.pattern.permute.xlu0 0
  %1178 = vperm.xlu0 %1177, %v1068
  %v1179 = vpop.permute.xlu0 %1178
  %1182 = vset.pattern.permute.xlu0 0
  %1183 = vperm.xlu0 %1182, %v1069
  %v1184 = vpop.permute.xlu0 %1183
  %1187 = vset.pattern.permute.xlu0 0
  %1188 = vperm.xlu0 %1187, %v1070
  %v1189 = vpop.permute.xlu0 %1188
  %1192 = vset.pattern.permute.xlu0 0
  %1193 = vperm.xlu0 %1192, %v1071
  %v1194 = vpop.permute.xlu0 %1193
  %1197 = vset.pattern.permute.xlu0 0
  %1198 = vperm.xlu0 %1197, %v1072
  %v1199 = vpop.permute.xlu0 %1198
  %1202 = vset.pattern.permute.xlu0 0
  %1203 = vperm.xlu0 %1202, %v1073
  %v1204 = vpop.permute.xlu0 %1203
  %1207 = vset.pattern.permute.xlu0 0
  %1208 = vperm.xlu0 %1207, %v1074
  %v1209 = vpop.permute.xlu0 %1208
  %1212 = vset.pattern.permute.xlu0 0
  %1213 = vperm.xlu0 %1212, %v1075
  %v1214 = vpop.permute.xlu0 %1213
  %1217 = vset.pattern.permute.xlu0 0
  %1218 = vperm.xlu0 %1217, %v1076
  %v1219 = vpop.permute.xlu0 %1218
  %1222 = vset.pattern.permute.xlu0 0
  %1223 = vperm.xlu0 %1222, %v1077
  %v1224 = vpop.permute.xlu0 %1223
  %1227 = vset.pattern.permute.xlu0 0
  %1228 = vperm.xlu0 %1227, %v1078
  %v1229 = vpop.permute.xlu0 %1228
  %1232 = vset.pattern.permute.xlu0 0
  %1233 = vperm.xlu0 %1232, %v1079
  %v1234 = vpop.permute.xlu0 %1233
  %1237 = vset.pattern.permute.xlu0 0
  %1238 = vperm.xlu0 %1237, %v1080
  %v1239 = vpop.permute.xlu0 %1238
  %v1241 = vmul.f32 %v1017, %v1084
  %v1242 = vmul.f32 %v1018, %v1089
  %v1243 = vmul.f32 %v1019, %v1094
  %v1244 = vmul.f32 %v1020, %v1099
  %v1245 = vmul.f32 %v1021, %v1104
  %v1246 = vmul.f32 %v1022, %v1109
  %v1247 = vmul.f32 %v1023, %v1114
  %v1248 = vmul.f32 %v1024, %v1119
  %v1249 = vmul.f32 %v1025, %v1124
  %v1250 = vmul.f32 %v1026, %v1129
  %v1251 = vmul.f32 %v1027, %v1134
  %v1252 = vmul.f32 %v1028, %v1139
  %v1253 = vmul.f32 %v1029, %v1144
  %v1254 = vmul.f32 %v1030, %v1149
  %v1255 = vmul.f32 %v1031, %v1154
  %v1256 = vmul.f32 %v1032, %v1159
  %v1257 = vmul.f32 %v1033, %v1164
  %v1258 = vmul.f32 %v1034, %v1169
  %v1259 = vmul.f32 %v1035, %v1174
  %v1260 = vmul.f32 %v1036, %v1179
  %v1261 = vmul.f32 %v1037, %v1184
  %v1262 = vmul.f32 %v1038, %v1189
  %v1263 = vmul.f32 %v1039, %v1194
  %v1264 = vmul.f32 %v1040, %v1199
  %v1265 = vmul.f32 %v1041, %v1204
  %v1266 = vmul.f32 %v1042, %v1209
  %v1267 = vmul.f32 %v1043, %v1214
  %v1268 = vmul.f32 %v1044, %v1219
  %v1269 = vmul.f32 %v1045, %v1224
  %v1270 = vmul.f32 %v1046, %v1229
  %v1271 = vmul.f32 %v1047, %v1234
  %v1272 = vmul.f32 %v1048, %v1239
  %v1273 = vadd.f32 %v632, %v1241
  %v1274 = vadd.f32 %v633, %v1242
  %v1275 = vadd.f32 %v634, %v1243
  %v1276 = vadd.f32 %v635, %v1244
  %v1277 = vadd.f32 %v636, %v1245
  %v1278 = vadd.f32 %v637, %v1246
  %v1279 = vadd.f32 %v638, %v1247
  %v1280 = vadd.f32 %v639, %v1248
  %v1281 = vadd.f32 %v640, %v1249
  %v1282 = vadd.f32 %v641, %v1250
  %v1283 = vadd.f32 %v642, %v1251
  %v1284 = vadd.f32 %v643, %v1252
  %v1285 = vadd.f32 %v644, %v1253
  %v1286 = vadd.f32 %v645, %v1254
  %v1287 = vadd.f32 %v646, %v1255
  %v1288 = vadd.f32 %v647, %v1256
  %v1289 = vadd.f32 %v648, %v1257
  %v1290 = vadd.f32 %v649, %v1258
  %v1291 = vadd.f32 %v650, %v1259
  %v1292 = vadd.f32 %v651, %v1260
  %v1293 = vadd.f32 %v652, %v1261
  %v1294 = vadd.f32 %v653, %v1262
  %v1295 = vadd.f32 %v654, %v1263
  %v1296 = vadd.f32 %v655, %v1264
  %v1297 = vadd.f32 %v656, %v1265
  %v1298 = vadd.f32 %v657, %v1266
  %v1299 = vadd.f32 %v658, %v1267
  %v1300 = vadd.f32 %v659, %v1268
  %v1301 = vadd.f32 %v660, %v1269
  %v1302 = vadd.f32 %v661, %v1270
  %v1303 = vadd.f32 %v662, %v1271
  %v1304 = vadd.f32 %v663, %v1272
  %v1305 = vld [vmem:[%s1 + $0x200] sm:$0xff]
  %v1306 = vld [vmem:[%s1 + $0x208] sm:$0xff]
  %v1307 = vld [vmem:[%s1 + $0x210] sm:$0xff]
  %v1308 = vld [vmem:[%s1 + $0x218] sm:$0xff]
  %v1309 = vld [vmem:[%s1 + $0x220] sm:$0xff]
  %v1310 = vld [vmem:[%s1 + $0x228] sm:$0xff]
  %v1311 = vld [vmem:[%s1 + $0x230] sm:$0xff]
  %v1312 = vld [vmem:[%s1 + $0x238] sm:$0xff]
  %v1313 = vld [vmem:[%s1 + $0x240] sm:$0xff]
  %v1314 = vld [vmem:[%s1 + $0x248] sm:$0xff]
  %v1315 = vld [vmem:[%s1 + $0x250] sm:$0xff]
  %v1316 = vld [vmem:[%s1 + $0x258] sm:$0xff]
  %v1317 = vld [vmem:[%s1 + $0x260] sm:$0xff]
  %v1318 = vld [vmem:[%s1 + $0x268] sm:$0xff]
  %v1319 = vld [vmem:[%s1 + $0x270] sm:$0xff]
  %v1320 = vld [vmem:[%s1 + $0x278] sm:$0xff]
  %v1321 = vld [vmem:[%s1 + $0x280] sm:$0xff]
  %v1322 = vld [vmem:[%s1 + $0x288] sm:$0xff]
  %v1323 = vld [vmem:[%s1 + $0x290] sm:$0xff]
  %v1324 = vld [vmem:[%s1 + $0x298] sm:$0xff]
  %v1325 = vld [vmem:[%s1 + $0x2a0] sm:$0xff]
  %v1326 = vld [vmem:[%s1 + $0x2a8] sm:$0xff]
  %v1327 = vld [vmem:[%s1 + $0x2b0] sm:$0xff]
  %v1328 = vld [vmem:[%s1 + $0x2b8] sm:$0xff]
  %v1329 = vld [vmem:[%s1 + $0x2c0] sm:$0xff]
  %v1330 = vld [vmem:[%s1 + $0x2c8] sm:$0xff]
  %v1331 = vld [vmem:[%s1 + $0x2d0] sm:$0xff]
  %v1332 = vld [vmem:[%s1 + $0x2d8] sm:$0xff]
  %v1333 = vld [vmem:[%s1 + $0x2e0] sm:$0xff]
  %v1334 = vld [vmem:[%s1 + $0x2e8] sm:$0xff]
  %v1335 = vld [vmem:[%s1 + $0x2f0] sm:$0xff]
  %v1336 = vld [vmem:[%s1 + $0x2f8] sm:$0xff]
  %v1338 = vsel %vm54, %v1305, 0
  %v1341 = vsel %vm54, %v1306, 0
  %v1344 = vsel %vm54, %v1307, 0
  %v1347 = vsel %vm54, %v1308, 0
  %v1350 = vsel %vm54, %v1309, 0
  %v1353 = vsel %vm54, %v1310, 0
  %v1356 = vsel %vm54, %v1311, 0
  %v1359 = vsel %vm54, %v1312, 0
  %v1362 = vsel %vm54, %v1313, 0
  %v1365 = vsel %vm54, %v1314, 0
  %v1368 = vsel %vm54, %v1315, 0
  %v1371 = vsel %vm54, %v1316, 0
  %v1374 = vsel %vm54, %v1317, 0
  %v1377 = vsel %vm54, %v1318, 0
  %v1380 = vsel %vm54, %v1319, 0
  %v1383 = vsel %vm54, %v1320, 0
  %v1386 = vsel %vm54, %v1321, 0
  %v1389 = vsel %vm54, %v1322, 0
  %v1392 = vsel %vm54, %v1323, 0
  %v1395 = vsel %vm54, %v1324, 0
  %v1398 = vsel %vm54, %v1325, 0
  %v1401 = vsel %vm54, %v1326, 0
  %v1404 = vsel %vm54, %v1327, 0
  %v1407 = vsel %vm54, %v1328, 0
  %v1410 = vsel %vm54, %v1329, 0
  %v1413 = vsel %vm54, %v1330, 0
  %v1416 = vsel %vm54, %v1331, 0
  %v1419 = vsel %vm54, %v1332, 0
  %v1422 = vsel %vm54, %v1333, 0
  %v1425 = vsel %vm54, %v1334, 0
  %v1428 = vsel %vm54, %v1335, 0
  %v1431 = vsel %vm54, %v1336, 0
  %1433 = vmatprep.subr.mxu0 0.0
  %1434 = vmatpush1.msra.mxu0 %v18
  %1435 = vmatprep.subr.mxu0 0.0
  %1436 = vmatpush1.msra.mxu0 %v19
  %1437 = vmatprep.subr.mxu0 0.0
  %1438 = vmatpush1.msra.mxu0 %v20
  %1439 = vmatprep.subr.mxu0 0.0
  %1440 = vmatpush1.msra.mxu0 %v21
  %1441 = vmatprep.subr.mxu0 0.0
  %1442 = vmatpush1.msra.mxu0 0.0
  %1443 = vmatprep.subr.mxu0 0.0
  %1444 = vmatpush1.msra.mxu0 0.0
  %1445 = vmatprep.subr.mxu0 0.0
  %1446 = vmatpush1.msra.mxu0 0.0
  %1447 = vmatprep.subr.mxu0 0.0
  %1448 = vmatpush1.msra.mxu0 0.0
  %1449 = vmatprep.subr.mxu0 0.0
  %1450 = vmatpush1.msra.mxu0 0.0
  %1451 = vmatprep.subr.mxu0 0.0
  %1452 = vmatpush1.msra.mxu0 0.0
  %1453 = vmatprep.subr.mxu0 0.0
  %1454 = vmatpush1.msra.mxu0 0.0
  %1455 = vmatprep.subr.mxu0 0.0
  %1456 = vmatpush1.msra.mxu0 0.0
  %1457 = vmatprep.subr.mxu0 0.0
  %1458 = vmatpush1.msra.mxu0 0.0
  %1459 = vmatprep.subr.mxu0 0.0
  %1460 = vmatpush1.msra.mxu0 0.0
  %1461 = vmatprep.subr.mxu0 0.0
  %1462 = vmatpush1.msra.mxu0 0.0
  %1463 = vmatprep.subr.mxu0 0.0
  %1464 = vmatpush1.msra.mxu0 0.0
  %1465 = vmatprep.subr.mxu0 0.0
  %1466 = vmatpush1.msra.mxu0 0.0
  %1467 = vmatprep.subr.mxu0 0.0
  %1468 = vmatpush1.msra.mxu0 0.0
  %1469 = vmatprep.subr.mxu0 0.0
  %1470 = vmatpush1.msra.mxu0 0.0
  %1471 = vmatprep.subr.mxu0 0.0
  %1472 = vmatpush1.msra.mxu0 0.0
  %1473 = vmatprep.subr.mxu0 0.0
  %1474 = vmatpush1.msra.mxu0 0.0
  %1475 = vmatprep.subr.mxu0 0.0
  %1476 = vmatpush1.msra.mxu0 0.0
  %1477 = vmatprep.subr.mxu0 0.0
  %1478 = vmatpush1.msra.mxu0 0.0
  %1479 = vmatprep.subr.mxu0 0.0
  %1480 = vmatpush1.msra.mxu0 0.0
  %1481 = vmatprep.subr.mxu0 0.0
  %1482 = vmatpush1.msra.mxu0 0.0
  %1483 = vmatprep.subr.mxu0 0.0
  %1484 = vmatpush1.msra.mxu0 0.0
  %1485 = vmatprep.subr.mxu0 0.0
  %1486 = vmatpush1.msra.mxu0 0.0
  %1487 = vmatprep.subr.mxu0 0.0
  %1488 = vmatpush1.msra.mxu0 0.0
  %1489 = vmatprep.subr.mxu0 0.0
  %1490 = vmatpush1.msra.mxu0 0.0
  %1491 = vmatprep.subr.mxu0 0.0
  %1492 = vmatpush1.msra.mxu0 0.0
  %1493 = vmatprep.subr.mxu0 0.0
  %1494 = vmatpush1.msra.mxu0 0.0
  %1495 = vmatprep.subr.mxu0 0.0
  %1496 = vmatpush1.msra.mxu0 0.0
  %1497 = vmatprep.mubr.f32.mxu0 0.0
  %1498 = vmatmul.mubr.f32.gmra.mrb[0].mxu0 %v1338
  %v1499 = vpop.f32.mrb[0].mxu0
  %v1500 = vadd.f32 0.0, %v1499
  %v1501 = vpop.f32.mrb[0].mxu0
  %1502 = vmatprep.mubr.f32.mxu0 0.0
  %1503 = vmatmul.mubr.f32.gmra.mrb[0].mxu0 %v1341
  %v1504 = vpop.f32.mrb[0].mxu0
  %v1505 = vadd.f32 0.0, %v1504
  %v1506 = vpop.f32.mrb[0].mxu0
  %1507 = vmatprep.mubr.f32.mxu0 0.0
  %1508 = vmatmul.mubr.f32.gmra.mrb[0].mxu0 %v1344
  %v1509 = vpop.f32.mrb[0].mxu0
  %v1510 = vadd.f32 0.0, %v1509
  %v1511 = vpop.f32.mrb[0].mxu0
  %1512 = vmatprep.mubr.f32.mxu0 0.0
  %1513 = vmatmul.mubr.f32.gmra.mrb[0].mxu0 %v1347
  %v1514 = vpop.f32.mrb[0].mxu0
  %v1515 = vadd.f32 0.0, %v1514
  %v1516 = vpop.f32.mrb[0].mxu0
  %1517 = vmatprep.mubr.f32.mxu0 0.0
  %1518 = vmatmul.mubr.f32.gmra.mrb[0].mxu0 %v1350
  %v1519 = vpop.f32.mrb[0].mxu0
  %v1520 = vadd.f32 0.0, %v1519
  %v1521 = vpop.f32.mrb[0].mxu0
  %1522 = vmatprep.mubr.f32.mxu0 0.0
  %1523 = vmatmul.mubr.f32.gmra.mrb[0].mxu0 %v1353
  %v1524 = vpop.f32.mrb[0].mxu0
  %v1525 = vadd.f32 0.0, %v1524
  %v1526 = vpop.f32.mrb[0].mxu0
  %1527 = vmatprep.mubr.f32.mxu0 0.0
  %1528 = vmatmul.mubr.f32.gmra.mrb[0].mxu0 %v1356
  %v1529 = vpop.f32.mrb[0].mxu0
  %v1530 = vadd.f32 0.0, %v1529
  %v1531 = vpop.f32.mrb[0].mxu0
  %1532 = vmatprep.mubr.f32.mxu0 0.0
  %1533 = vmatmul.mubr.f32.gmra.mrb[0].mxu0 %v1359
  %v1534 = vpop.f32.mrb[0].mxu0
  %v1535 = vadd.f32 0.0, %v1534
  %v1536 = vpop.f32.mrb[0].mxu0
  %1537 = vmatprep.mubr.f32.mxu0 0.0
  %1538 = vmatmul.mubr.f32.gmra.mrb[0].mxu0 %v1362
  %v1539 = vpop.f32.mrb[0].mxu0
  %v1540 = vadd.f32 0.0, %v1539
  %v1541 = vpop.f32.mrb[0].mxu0
  %1542 = vmatprep.mubr.f32.mxu0 0.0
  %1543 = vmatmul.mubr.f32.gmra.mrb[0].mxu0 %v1365
  %v1544 = vpop.f32.mrb[0].mxu0
  %v1545 = vadd.f32 0.0, %v1544
  %v1546 = vpop.f32.mrb[0].mxu0
  %1547 = vmatprep.mubr.f32.mxu0 0.0
  %1548 = vmatmul.mubr.f32.gmra.mrb[0].mxu0 %v1368
  %v1549 = vpop.f32.mrb[0].mxu0
  %v1550 = vadd.f32 0.0, %v1549
  %v1551 = vpop.f32.mrb[0].mxu0
  %1552 = vmatprep.mubr.f32.mxu0 0.0
  %1553 = vmatmul.mubr.f32.gmra.mrb[0].mxu0 %v1371
  %v1554 = vpop.f32.mrb[0].mxu0
  %v1555 = vadd.f32 0.0, %v1554
  %v1556 = vpop.f32.mrb[0].mxu0
  %1557 = vmatprep.mubr.f32.mxu0 0.0
  %1558 = vmatmul.mubr.f32.gmra.mrb[0].mxu0 %v1374
  %v1559 = vpop.f32.mrb[0].mxu0
  %v1560 = vadd.f32 0.0, %v1559
  %v1561 = vpop.f32.mrb[0].mxu0
  %1562 = vmatprep.mubr.f32.mxu0 0.0
  %1563 = vmatmul.mubr.f32.gmra.mrb[0].mxu0 %v1377
  %v1564 = vpop.f32.mrb[0].mxu0
  %v1565 = vadd.f32 0.0, %v1564
  %v1566 = vpop.f32.mrb[0].mxu0
  %1567 = vmatprep.mubr.f32.mxu0 0.0
  %1568 = vmatmul.mubr.f32.gmra.mrb[0].mxu0 %v1380
  %v1569 = vpop.f32.mrb[0].mxu0
  %v1570 = vadd.f32 0.0, %v1569
  %v1571 = vpop.f32.mrb[0].mxu0
  %1572 = vmatprep.mubr.f32.mxu0 0.0
  %1573 = vmatmul.mubr.f32.gmra.mrb[0].mxu0 %v1383
  %v1574 = vpop.f32.mrb[0].mxu0
  %v1575 = vadd.f32 0.0, %v1574
  %v1576 = vpop.f32.mrb[0].mxu0
  %1577 = vmatprep.mubr.f32.mxu0 0.0
  %1578 = vmatmul.mubr.f32.gmra.mrb[0].mxu0 %v1386
  %v1579 = vpop.f32.mrb[0].mxu0
  %v1580 = vadd.f32 0.0, %v1579
  %v1581 = vpop.f32.mrb[0].mxu0
  %1582 = vmatprep.mubr.f32.mxu0 0.0
  %1583 = vmatmul.mubr.f32.gmra.mrb[0].mxu0 %v1389
  %v1584 = vpop.f32.mrb[0].mxu0
  %v1585 = vadd.f32 0.0, %v1584
  %v1586 = vpop.f32.mrb[0].mxu0
  %1587 = vmatprep.mubr.f32.mxu0 0.0
  %1588 = vmatmul.mubr.f32.gmra.mrb[0].mxu0 %v1392
  %v1589 = vpop.f32.mrb[0].mxu0
  %v1590 = vadd.f32 0.0, %v1589
  %v1591 = vpop.f32.mrb[0].mxu0
  %1592 = vmatprep.mubr.f32.mxu0 0.0
  %1593 = vmatmul.mubr.f32.gmra.mrb[0].mxu0 %v1395
  %v1594 = vpop.f32.mrb[0].mxu0
  %v1595 = vadd.f32 0.0, %v1594
  %v1596 = vpop.f32.mrb[0].mxu0
  %1597 = vmatprep.mubr.f32.mxu0 0.0
  %1598 = vmatmul.mubr.f32.gmra.mrb[0].mxu0 %v1398
  %v1599 = vpop.f32.mrb[0].mxu0
  %v1600 = vadd.f32 0.0, %v1599
  %v1601 = vpop.f32.mrb[0].mxu0
  %1602 = vmatprep.mubr.f32.mxu0 0.0
  %1603 = vmatmul.mubr.f32.gmra.mrb[0].mxu0 %v1401
  %v1604 = vpop.f32.mrb[0].mxu0
  %v1605 = vadd.f32 0.0, %v1604
  %v1606 = vpop.f32.mrb[0].mxu0
  %1607 = vmatprep.mubr.f32.mxu0 0.0
  %1608 = vmatmul.mubr.f32.gmra.mrb[0].mxu0 %v1404
  %v1609 = vpop.f32.mrb[0].mxu0
  %v1610 = vadd.f32 0.0, %v1609
  %v1611 = vpop.f32.mrb[0].mxu0
  %1612 = vmatprep.mubr.f32.mxu0 0.0
  %1613 = vmatmul.mubr.f32.gmra.mrb[0].mxu0 %v1407
  %v1614 = vpop.f32.mrb[0].mxu0
  %v1615 = vadd.f32 0.0, %v1614
  %v1616 = vpop.f32.mrb[0].mxu0
  %1617 = vmatprep.mubr.f32.mxu0 0.0
  %1618 = vmatmul.mubr.f32.gmra.mrb[0].mxu0 %v1410
  %v1619 = vpop.f32.mrb[0].mxu0
  %v1620 = vadd.f32 0.0, %v1619
  %v1621 = vpop.f32.mrb[0].mxu0
  %1622 = vmatprep.mubr.f32.mxu0 0.0
  %1623 = vmatmul.mubr.f32.gmra.mrb[0].mxu0 %v1413
  %v1624 = vpop.f32.mrb[0].mxu0
  %v1625 = vadd.f32 0.0, %v1624
  %v1626 = vpop.f32.mrb[0].mxu0
  %1627 = vmatprep.mubr.f32.mxu0 0.0
  %1628 = vmatmul.mubr.f32.gmra.mrb[0].mxu0 %v1416
  %v1629 = vpop.f32.mrb[0].mxu0
  %v1630 = vadd.f32 0.0, %v1629
  %v1631 = vpop.f32.mrb[0].mxu0
  %1632 = vmatprep.mubr.f32.mxu0 0.0
  %1633 = vmatmul.mubr.f32.gmra.mrb[0].mxu0 %v1419
  %v1634 = vpop.f32.mrb[0].mxu0
  %v1635 = vadd.f32 0.0, %v1634
  %v1636 = vpop.f32.mrb[0].mxu0
  %1637 = vmatprep.mubr.f32.mxu0 0.0
  %1638 = vmatmul.mubr.f32.gmra.mrb[0].mxu0 %v1422
  %v1639 = vpop.f32.mrb[0].mxu0
  %v1640 = vadd.f32 0.0, %v1639
  %v1641 = vpop.f32.mrb[0].mxu0
  %1642 = vmatprep.mubr.f32.mxu0 0.0
  %1643 = vmatmul.mubr.f32.gmra.mrb[0].mxu0 %v1425
  %v1644 = vpop.f32.mrb[0].mxu0
  %v1645 = vadd.f32 0.0, %v1644
  %v1646 = vpop.f32.mrb[0].mxu0
  %1647 = vmatprep.mubr.f32.mxu0 0.0
  %1648 = vmatmul.mubr.f32.gmra.mrb[0].mxu0 %v1428
  %v1649 = vpop.f32.mrb[0].mxu0
  %v1650 = vadd.f32 0.0, %v1649
  %v1651 = vpop.f32.mrb[0].mxu0
  %1652 = vmatprep.mubr.f32.mxu0 0.0
  %1653 = vmatmul.mubr.f32.gmra.mrb[0].mxu0 %v1431
  %v1654 = vpop.f32.mrb[0].mxu0
  %v1655 = vadd.f32 0.0, %v1654
  %v1656 = vpop.f32.mrb[0].mxu0
  %1657 = vdwg.mxu0
  %v1658 = vtanh.pop %v1500
  %v1659 = vtanh.pop %v1505
  %v1660 = vtanh.pop %v1510
  %v1661 = vtanh.pop %v1515
  %v1662 = vtanh.pop %v1520
  %v1663 = vtanh.pop %v1525
  %v1664 = vtanh.pop %v1530
  %v1665 = vtanh.pop %v1535
  %v1666 = vtanh.pop %v1540
  %v1667 = vtanh.pop %v1545
  %v1668 = vtanh.pop %v1550
  %v1669 = vtanh.pop %v1555
  %v1670 = vtanh.pop %v1560
  %v1671 = vtanh.pop %v1565
  %v1672 = vtanh.pop %v1570
  %v1673 = vtanh.pop %v1575
  %v1674 = vtanh.pop %v1580
  %v1675 = vtanh.pop %v1585
  %v1676 = vtanh.pop %v1590
  %v1677 = vtanh.pop %v1595
  %v1678 = vtanh.pop %v1600
  %v1679 = vtanh.pop %v1605
  %v1680 = vtanh.pop %v1610
  %v1681 = vtanh.pop %v1615
  %v1682 = vtanh.pop %v1620
  %v1683 = vtanh.pop %v1625
  %v1684 = vtanh.pop %v1630
  %v1685 = vtanh.pop %v1635
  %v1686 = vtanh.pop %v1640
  %v1687 = vtanh.pop %v1645
  %v1688 = vtanh.pop %v1650
  %v1689 = vtanh.pop %v1655
  %v1690 = vld [vmem:[%s2 + $0x200] sm:$0xff]
  %v1691 = vld [vmem:[%s2 + $0x208] sm:$0xff]
  %v1692 = vld [vmem:[%s2 + $0x210] sm:$0xff]
  %v1693 = vld [vmem:[%s2 + $0x218] sm:$0xff]
  %v1694 = vld [vmem:[%s2 + $0x220] sm:$0xff]
  %v1695 = vld [vmem:[%s2 + $0x228] sm:$0xff]
  %v1696 = vld [vmem:[%s2 + $0x230] sm:$0xff]
  %v1697 = vld [vmem:[%s2 + $0x238] sm:$0xff]
  %v1698 = vld [vmem:[%s2 + $0x240] sm:$0xff]
  %v1699 = vld [vmem:[%s2 + $0x248] sm:$0xff]
  %v1700 = vld [vmem:[%s2 + $0x250] sm:$0xff]
  %v1701 = vld [vmem:[%s2 + $0x258] sm:$0xff]
  %v1702 = vld [vmem:[%s2 + $0x260] sm:$0xff]
  %v1703 = vld [vmem:[%s2 + $0x268] sm:$0xff]
  %v1704 = vld [vmem:[%s2 + $0x270] sm:$0xff]
  %v1705 = vld [vmem:[%s2 + $0x278] sm:$0xff]
  %v1706 = vld [vmem:[%s2 + $0x280] sm:$0xff]
  %v1707 = vld [vmem:[%s2 + $0x288] sm:$0xff]
  %v1708 = vld [vmem:[%s2 + $0x290] sm:$0xff]
  %v1709 = vld [vmem:[%s2 + $0x298] sm:$0xff]
  %v1710 = vld [vmem:[%s2 + $0x2a0] sm:$0xff]
  %v1711 = vld [vmem:[%s2 + $0x2a8] sm:$0xff]
  %v1712 = vld [vmem:[%s2 + $0x2b0] sm:$0xff]
  %v1713 = vld [vmem:[%s2 + $0x2b8] sm:$0xff]
  %v1714 = vld [vmem:[%s2 + $0x2c0] sm:$0xff]
  %v1715 = vld [vmem:[%s2 + $0x2c8] sm:$0xff]
  %v1716 = vld [vmem:[%s2 + $0x2d0] sm:$0xff]
  %v1717 = vld [vmem:[%s2 + $0x2d8] sm:$0xff]
  %v1718 = vld [vmem:[%s2 + $0x2e0] sm:$0xff]
  %v1719 = vld [vmem:[%s2 + $0x2e8] sm:$0xff]
  %v1720 = vld [vmem:[%s2 + $0x2f0] sm:$0xff]
  %v1721 = vld [vmem:[%s2 + $0x2f8] sm:$0xff]
  %1723 = vset.pattern.permute.xlu0 0
  %1724 = vperm.xlu0 %1723, %v1690
  %v1725 = vpop.permute.xlu0 %1724
  %1728 = vset.pattern.permute.xlu0 0
  %1729 = vperm.xlu0 %1728, %v1691
  %v1730 = vpop.permute.xlu0 %1729
  %1733 = vset.pattern.permute.xlu0 0
  %1734 = vperm.xlu0 %1733, %v1692
  %v1735 = vpop.permute.xlu0 %1734
  %1738 = vset.pattern.permute.xlu0 0
  %1739 = vperm.xlu0 %1738, %v1693
  %v1740 = vpop.permute.xlu0 %1739
  %1743 = vset.pattern.permute.xlu0 0
  %1744 = vperm.xlu0 %1743, %v1694
  %v1745 = vpop.permute.xlu0 %1744
  %1748 = vset.pattern.permute.xlu0 0
  %1749 = vperm.xlu0 %1748, %v1695
  %v1750 = vpop.permute.xlu0 %1749
  %1753 = vset.pattern.permute.xlu0 0
  %1754 = vperm.xlu0 %1753, %v1696
  %v1755 = vpop.permute.xlu0 %1754
  %1758 = vset.pattern.permute.xlu0 0
  %1759 = vperm.xlu0 %1758, %v1697
  %v1760 = vpop.permute.xlu0 %1759
  %1763 = vset.pattern.permute.xlu0 0
  %1764 = vperm.xlu0 %1763, %v1698
  %v1765 = vpop.permute.xlu0 %1764
  %1768 = vset.pattern.permute.xlu0 0
  %1769 = vperm.xlu0 %1768, %v1699
  %v1770 = vpop.permute.xlu0 %1769
  %1773 = vset.pattern.permute.xlu0 0
  %1774 = vperm.xlu0 %1773, %v1700
  %v1775 = vpop.permute.xlu0 %1774
  %1778 = vset.pattern.permute.xlu0 0
  %1779 = vperm.xlu0 %1778, %v1701
  %v1780 = vpop.permute.xlu0 %1779
  %1783 = vset.pattern.permute.xlu0 0
  %1784 = vperm.xlu0 %1783, %v1702
  %v1785 = vpop.permute.xlu0 %1784
  %1788 = vset.pattern.permute.xlu0 0
  %1789 = vperm.xlu0 %1788, %v1703
  %v1790 = vpop.permute.xlu0 %1789
  %1793 = vset.pattern.permute.xlu0 0
  %1794 = vperm.xlu0 %1793, %v1704
  %v1795 = vpop.permute.xlu0 %1794
  %1798 = vset.pattern.permute.xlu0 0
  %1799 = vperm.xlu0 %1798, %v1705
  %v1800 = vpop.permute.xlu0 %1799
  %1803 = vset.pattern.permute.xlu0 0
  %1804 = vperm.xlu0 %1803, %v1706
  %v1805 = vpop.permute.xlu0 %1804
  %1808 = vset.pattern.permute.xlu0 0
  %1809 = vperm.xlu0 %1808, %v1707
  %v1810 = vpop.permute.xlu0 %1809
  %1813 = vset.pattern.permute.xlu0 0
  %1814 = vperm.xlu0 %1813, %v1708
  %v1815 = vpop.permute.xlu0 %1814
  %1818 = vset.pattern.permute.xlu0 0
  %1819 = vperm.xlu0 %1818, %v1709
  %v1820 = vpop.permute.xlu0 %1819
  %1823 = vset.pattern.permute.xlu0 0
  %1824 = vperm.xlu0 %1823, %v1710
  %v1825 = vpop.permute.xlu0 %1824
  %1828 = vset.pattern.permute.xlu0 0
  %1829 = vperm.xlu0 %1828, %v1711
  %v1830 = vpop.permute.xlu0 %1829
  %1833 = vset.pattern.permute.xlu0 0
  %1834 = vperm.xlu0 %1833, %v1712
  %v1835 = vpop.permute.xlu0 %1834
  %1838 = vset.pattern.permute.xlu0 0
  %1839 = vperm.xlu0 %1838, %v1713
  %v1840 = vpop.permute.xlu0 %1839
  %1843 = vset.pattern.permute.xlu0 0
  %1844 = vperm.xlu0 %1843, %v1714
  %v1845 = vpop.permute.xlu0 %1844
  %1848 = vset.pattern.permute.xlu0 0
  %1849 = vperm.xlu0 %1848, %v1715
  %v1850 = vpop.permute.xlu0 %1849
  %1853 = vset.pattern.permute.xlu0 0
  %1854 = vperm.xlu0 %1853, %v1716
  %v1855 = vpop.permute.xlu0 %1854
  %1858 = vset.pattern.permute.xlu0 0
  %1859 = vperm.xlu0 %1858, %v1717
  %v1860 = vpop.permute.xlu0 %1859
  %1863 = vset.pattern.permute.xlu0 0
  %1864 = vperm.xlu0 %1863, %v1718
  %v1865 = vpop.permute.xlu0 %1864
  %1868 = vset.pattern.permute.xlu0 0
  %1869 = vperm.xlu0 %1868, %v1719
  %v1870 = vpop.permute.xlu0 %1869
  %1873 = vset.pattern.permute.xlu0 0
  %1874 = vperm.xlu0 %1873, %v1720
  %v1875 = vpop.permute.xlu0 %1874
  %1878 = vset.pattern.permute.xlu0 0
  %1879 = vperm.xlu0 %1878, %v1721
  %v1880 = vpop.permute.xlu0 %1879
  %v1882 = vmul.f32 %v1658, %v1725
  %v1883 = vmul.f32 %v1659, %v1730
  %v1884 = vmul.f32 %v1660, %v1735
  %v1885 = vmul.f32 %v1661, %v1740
  %v1886 = vmul.f32 %v1662, %v1745
  %v1887 = vmul.f32 %v1663, %v1750
  %v1888 = vmul.f32 %v1664, %v1755
  %v1889 = vmul.f32 %v1665, %v1760
  %v1890 = vmul.f32 %v1666, %v1765
  %v1891 = vmul.f32 %v1667, %v1770
  %v1892 = vmul.f32 %v1668, %v1775
  %v1893 = vmul.f32 %v1669, %v1780
  %v1894 = vmul.f32 %v1670, %v1785
  %v1895 = vmul.f32 %v1671, %v1790
  %v1896 = vmul.f32 %v1672, %v1795
  %v1897 = vmul.f32 %v1673, %v1800
  %v1898 = vmul.f32 %v1674, %v1805
  %v1899 = vmul.f32 %v1675, %v1810
  %v1900 = vmul.f32 %v1676, %v1815
  %v1901 = vmul.f32 %v1677, %v1820
  %v1902 = vmul.f32 %v1678, %v1825
  %v1903 = vmul.f32 %v1679, %v1830
  %v1904 = vmul.f32 %v1680, %v1835
  %v1905 = vmul.f32 %v1681, %v1840
  %v1906 = vmul.f32 %v1682, %v1845
  %v1907 = vmul.f32 %v1683, %v1850
  %v1908 = vmul.f32 %v1684, %v1855
  %v1909 = vmul.f32 %v1685, %v1860
  %v1910 = vmul.f32 %v1686, %v1865
  %v1911 = vmul.f32 %v1687, %v1870
  %v1912 = vmul.f32 %v1688, %v1875
  %v1913 = vmul.f32 %v1689, %v1880
  %v1914 = vadd.f32 %v1273, %v1882
  %v1915 = vadd.f32 %v1274, %v1883
  %v1916 = vadd.f32 %v1275, %v1884
  %v1917 = vadd.f32 %v1276, %v1885
  %v1918 = vadd.f32 %v1277, %v1886
  %v1919 = vadd.f32 %v1278, %v1887
  %v1920 = vadd.f32 %v1279, %v1888
  %v1921 = vadd.f32 %v1280, %v1889
  %v1922 = vadd.f32 %v1281, %v1890
  %v1923 = vadd.f32 %v1282, %v1891
  %v1924 = vadd.f32 %v1283, %v1892
  %v1925 = vadd.f32 %v1284, %v1893
  %v1926 = vadd.f32 %v1285, %v1894
  %v1927 = vadd.f32 %v1286, %v1895
  %v1928 = vadd.f32 %v1287, %v1896
  %v1929 = vadd.f32 %v1288, %v1897
  %v1930 = vadd.f32 %v1289, %v1898
  %v1931 = vadd.f32 %v1290, %v1899
  %v1932 = vadd.f32 %v1291, %v1900
  %v1933 = vadd.f32 %v1292, %v1901
  %v1934 = vadd.f32 %v1293, %v1902
  %v1935 = vadd.f32 %v1294, %v1903
  %v1936 = vadd.f32 %v1295, %v1904
  %v1937 = vadd.f32 %v1296, %v1905
  %v1938 = vadd.f32 %v1297, %v1906
  %v1939 = vadd.f32 %v1298, %v1907
  %v1940 = vadd.f32 %v1299, %v1908
  %v1941 = vadd.f32 %v1300, %v1909
  %v1942 = vadd.f32 %v1301, %v1910
  %v1943 = vadd.f32 %v1302, %v1911
  %v1944 = vadd.f32 %v1303, %v1912
  %v1945 = vadd.f32 %v1304, %v1913
  %v1946 = vld [vmem:[%s1 + $0x300] sm:$0xff]
  %v1947 = vld [vmem:[%s1 + $0x308] sm:$0xff]
  %v1948 = vld [vmem:[%s1 + $0x310] sm:$0xff]
  %v1949 = vld [vmem:[%s1 + $0x318] sm:$0xff]
  %v1950 = vld [vmem:[%s1 + $0x320] sm:$0xff]
  %v1951 = vld [vmem:[%s1 + $0x328] sm:$0xff]
  %v1952 = vld [vmem:[%s1 + $0x330] sm:$0xff]
  %v1953 = vld [vmem:[%s1 + $0x338] sm:$0xff]
  %v1954 = vld [vmem:[%s1 + $0x340] sm:$0xff]
  %v1955 = vld [vmem:[%s1 + $0x348] sm:$0xff]
  %v1956 = vld [vmem:[%s1 + $0x350] sm:$0xff]
  %v1957 = vld [vmem:[%s1 + $0x358] sm:$0xff]
  %v1958 = vld [vmem:[%s1 + $0x360] sm:$0xff]
  %v1959 = vld [vmem:[%s1 + $0x368] sm:$0xff]
  %v1960 = vld [vmem:[%s1 + $0x370] sm:$0xff]
  %v1961 = vld [vmem:[%s1 + $0x378] sm:$0xff]
  %v1962 = vld [vmem:[%s1 + $0x380] sm:$0xff]
  %v1963 = vld [vmem:[%s1 + $0x388] sm:$0xff]
  %v1964 = vld [vmem:[%s1 + $0x390] sm:$0xff]
  %v1965 = vld [vmem:[%s1 + $0x398] sm:$0xff]
  %v1966 = vld [vmem:[%s1 + $0x3a0] sm:$0xff]
  %v1967 = vld [vmem:[%s1 + $0x3a8] sm:$0xff]
  %v1968 = vld [vmem:[%s1 + $0x3b0] sm:$0xff]
  %v1969 = vld [vmem:[%s1 + $0x3b8] sm:$0xff]
  %v1970 = vld [vmem:[%s1 + $0x3c0] sm:$0xff]
  %v1971 = vld [vmem:[%s1 + $0x3c8] sm:$0xff]
  %v1972 = vld [vmem:[%s1 + $0x3d0] sm:$0xff]
  %v1973 = vld [vmem:[%s1 + $0x3d8] sm:$0xff]
  %v1974 = vld [vmem:[%s1 + $0x3e0] sm:$0xff]
  %v1975 = vld [vmem:[%s1 + $0x3e8] sm:$0xff]
  %v1976 = vld [vmem:[%s1 + $0x3f0] sm:$0xff]
  %v1977 = vld [vmem:[%s1 + $0x3f8] sm:$0xff]
  %v1979 = vsel %vm54, %v1946, 0
  %v1982 = vsel %vm54, %v1947, 0
  %v1985 = vsel %vm54, %v1948, 0
  %v1988 = vsel %vm54, %v1949, 0
  %v1991 = vsel %vm54, %v1950, 0
  %v1994 = vsel %vm54, %v1951, 0
  %v1997 = vsel %vm54, %v1952, 0
  %v2000 = vsel %vm54, %v1953, 0
  %v2003 = vsel %vm54, %v1954, 0
  %v2006 = vsel %vm54, %v1955, 0
  %v2009 = vsel %vm54, %v1956, 0
  %v2012 = vsel %vm54, %v1957, 0
  %v2015 = vsel %vm54, %v1958, 0
  %v2018 = vsel %vm54, %v1959, 0
  %v2021 = vsel %vm54, %v1960, 0
  %v2024 = vsel %vm54, %v1961, 0
  %v2027 = vsel %vm54, %v1962, 0
  %v2030 = vsel %vm54, %v1963, 0
  %v2033 = vsel %vm54, %v1964, 0
  %v2036 = vsel %vm54, %v1965, 0
  %v2039 = vsel %vm54, %v1966, 0
  %v2042 = vsel %vm54, %v1967, 0
  %v2045 = vsel %vm54, %v1968, 0
  %v2048 = vsel %vm54, %v1969, 0
  %v2051 = vsel %vm54, %v1970, 0
  %v2054 = vsel %vm54, %v1971, 0
  %v2057 = vsel %vm54, %v1972, 0
  %v2060 = vsel %vm54, %v1973, 0
  %v2063 = vsel %vm54, %v1974, 0
  %v2066 = vsel %vm54, %v1975, 0
  %v2069 = vsel %vm54, %v1976, 0
  %v2072 = vsel %vm54, %v1977, 0
  %2074 = vmatprep.subr.mxu0 0.0
  %2075 = vmatpush1.msra.mxu0 %v18
  %2076 = vmatprep.subr.mxu0 0.0
  %2077 = vmatpush1.msra.mxu0 %v19
  %2078 = vmatprep.subr.mxu0 0.0
  %2079 = vmatpush1.msra.mxu0 %v20
  %2080 = vmatprep.subr.mxu0 0.0
  %2081 = vmatpush1.msra.mxu0 %v21
  %2082 = vmatprep.subr.mxu0 0.0
  %2083 = vmatpush1.msra.mxu0 0.0
  %2084 = vmatprep.subr.mxu0 0.0
  %2085 = vmatpush1.msra.mxu0 0.0
  %2086 = vmatprep.subr.mxu0 0.0
  %2087 = vmatpush1.msra.mxu0 0.0
  %2088 = vmatprep.subr.mxu0 0.0
  %2089 = vmatpush1.msra.mxu0 0.0
  %2090 = vmatprep.subr.mxu0 0.0
  %2091 = vmatpush1.msra.mxu0 0.0
  %2092 = vmatprep.subr.mxu0 0.0
  %2093 = vmatpush1.msra.mxu0 0.0
  %2094 = vmatprep.subr.mxu0 0.0
  %2095 = vmatpush1.msra.mxu0 0.0
  %2096 = vmatprep.subr.mxu0 0.0
  %2097 = vmatpush1.msra.mxu0 0.0
  %2098 = vmatprep.subr.mxu0 0.0
  %2099 = vmatpush1.msra.mxu0 0.0
  %2100 = vmatprep.subr.mxu0 0.0
  %2101 = vmatpush1.msra.mxu0 0.0
  %2102 = vmatprep.subr.mxu0 0.0
  %2103 = vmatpush1.msra.mxu0 0.0
  %2104 = vmatprep.subr.mxu0 0.0
  %2105 = vmatpush1.msra.mxu0 0.0
  %2106 = vmatprep.subr.mxu0 0.0
  %2107 = vmatpush1.msra.mxu0 0.0
  %2108 = vmatprep.subr.mxu0 0.0
  %2109 = vmatpush1.msra.mxu0 0.0
  %2110 = vmatprep.subr.mxu0 0.0
  %2111 = vmatpush1.msra.mxu0 0.0
  %2112 = vmatprep.subr.mxu0 0.0
  %2113 = vmatpush1.msra.mxu0 0.0
  %2114 = vmatprep.subr.mxu0 0.0
  %2115 = vmatpush1.msra.mxu0 0.0
  %2116 = vmatprep.subr.mxu0 0.0
  %2117 = vmatpush1.msra.mxu0 0.0
  %2118 = vmatprep.subr.mxu0 0.0
  %2119 = vmatpush1.msra.mxu0 0.0
  %2120 = vmatprep.subr.mxu0 0.0
  %2121 = vmatpush1.msra.mxu0 0.0
  %2122 = vmatprep.subr.mxu0 0.0
  %2123 = vmatpush1.msra.mxu0 0.0
  %2124 = vmatprep.subr.mxu0 0.0
  %2125 = vmatpush1.msra.mxu0 0.0
  %2126 = vmatprep.subr.mxu0 0.0
  %2127 = vmatpush1.msra.mxu0 0.0
  %2128 = vmatprep.subr.mxu0 0.0
  %2129 = vmatpush1.msra.mxu0 0.0
  %2130 = vmatprep.subr.mxu0 0.0
  %2131 = vmatpush1.msra.mxu0 0.0
  %2132 = vmatprep.subr.mxu0 0.0
  %2133 = vmatpush1.msra.mxu0 0.0
  %2134 = vmatprep.subr.mxu0 0.0
  %2135 = vmatpush1.msra.mxu0 0.0
  %2136 = vmatprep.subr.mxu0 0.0
  %2137 = vmatpush1.msra.mxu0 0.0
  %2138 = vmatprep.mubr.f32.mxu0 0.0
  %2139 = vmatmul.mubr.f32.gmra.mrb[0].mxu0 %v1979
  %v2140 = vpop.f32.mrb[0].mxu0
  %v2141 = vadd.f32 0.0, %v2140
  %v2142 = vpop.f32.mrb[0].mxu0
  %2143 = vmatprep.mubr.f32.mxu0 0.0
  %2144 = vmatmul.mubr.f32.gmra.mrb[0].mxu0 %v1982
  %v2145 = vpop.f32.mrb[0].mxu0
  %v2146 = vadd.f32 0.0, %v2145
  %v2147 = vpop.f32.mrb[0].mxu0
  %2148 = vmatprep.mubr.f32.mxu0 0.0
  %2149 = vmatmul.mubr.f32.gmra.mrb[0].mxu0 %v1985
  %v2150 = vpop.f32.mrb[0].mxu0
  %v2151 = vadd.f32 0.0, %v2150
  %v2152 = vpop.f32.mrb[0].mxu0
  %2153 = vmatprep.mubr.f32.mxu0 0.0
  %2154 = vmatmul.mubr.f32.gmra.mrb[0].mxu0 %v1988
  %v2155 = vpop.f32.mrb[0].mxu0
  %v2156 = vadd.f32 0.0, %v2155
  %v2157 = vpop.f32.mrb[0].mxu0
  %2158 = vmatprep.mubr.f32.mxu0 0.0
  %2159 = vmatmul.mubr.f32.gmra.mrb[0].mxu0 %v1991
  %v2160 = vpop.f32.mrb[0].mxu0
  %v2161 = vadd.f32 0.0, %v2160
  %v2162 = vpop.f32.mrb[0].mxu0
  %2163 = vmatprep.mubr.f32.mxu0 0.0
  %2164 = vmatmul.mubr.f32.gmra.mrb[0].mxu0 %v1994
  %v2165 = vpop.f32.mrb[0].mxu0
  %v2166 = vadd.f32 0.0, %v2165
  %v2167 = vpop.f32.mrb[0].mxu0
  %2168 = vmatprep.mubr.f32.mxu0 0.0
  %2169 = vmatmul.mubr.f32.gmra.mrb[0].mxu0 %v1997
  %v2170 = vpop.f32.mrb[0].mxu0
  %v2171 = vadd.f32 0.0, %v2170
  %v2172 = vpop.f32.mrb[0].mxu0
  %2173 = vmatprep.mubr.f32.mxu0 0.0
  %2174 = vmatmul.mubr.f32.gmra.mrb[0].mxu0 %v2000
  %v2175 = vpop.f32.mrb[0].mxu0
  %v2176 = vadd.f32 0.0, %v2175
  %v2177 = vpop.f32.mrb[0].mxu0
  %2178 = vmatprep.mubr.f32.mxu0 0.0
  %2179 = vmatmul.mubr.f32.gmra.mrb[0].mxu0 %v2003
  %v2180 = vpop.f32.mrb[0].mxu0
  %v2181 = vadd.f32 0.0, %v2180
  %v2182 = vpop.f32.mrb[0].mxu0
  %2183 = vmatprep.mubr.f32.mxu0 0.0
  %2184 = vmatmul.mubr.f32.gmra.mrb[0].mxu0 %v2006
  %v2185 = vpop.f32.mrb[0].mxu0
  %v2186 = vadd.f32 0.0, %v2185
  %v2187 = vpop.f32.mrb[0].mxu0
  %2188 = vmatprep.mubr.f32.mxu0 0.0
  %2189 = vmatmul.mubr.f32.gmra.mrb[0].mxu0 %v2009
  %v2190 = vpop.f32.mrb[0].mxu0
  %v2191 = vadd.f32 0.0, %v2190
  %v2192 = vpop.f32.mrb[0].mxu0
  %2193 = vmatprep.mubr.f32.mxu0 0.0
  %2194 = vmatmul.mubr.f32.gmra.mrb[0].mxu0 %v2012
  %v2195 = vpop.f32.mrb[0].mxu0
  %v2196 = vadd.f32 0.0, %v2195
  %v2197 = vpop.f32.mrb[0].mxu0
  %2198 = vmatprep.mubr.f32.mxu0 0.0
  %2199 = vmatmul.mubr.f32.gmra.mrb[0].mxu0 %v2015
  %v2200 = vpop.f32.mrb[0].mxu0
  %v2201 = vadd.f32 0.0, %v2200
  %v2202 = vpop.f32.mrb[0].mxu0
  %2203 = vmatprep.mubr.f32.mxu0 0.0
  %2204 = vmatmul.mubr.f32.gmra.mrb[0].mxu0 %v2018
  %v2205 = vpop.f32.mrb[0].mxu0
  %v2206 = vadd.f32 0.0, %v2205
  %v2207 = vpop.f32.mrb[0].mxu0
  %2208 = vmatprep.mubr.f32.mxu0 0.0
  %2209 = vmatmul.mubr.f32.gmra.mrb[0].mxu0 %v2021
  %v2210 = vpop.f32.mrb[0].mxu0
  %v2211 = vadd.f32 0.0, %v2210
  %v2212 = vpop.f32.mrb[0].mxu0
  %2213 = vmatprep.mubr.f32.mxu0 0.0
  %2214 = vmatmul.mubr.f32.gmra.mrb[0].mxu0 %v2024
  %v2215 = vpop.f32.mrb[0].mxu0
  %v2216 = vadd.f32 0.0, %v2215
  %v2217 = vpop.f32.mrb[0].mxu0
  %2218 = vmatprep.mubr.f32.mxu0 0.0
  %2219 = vmatmul.mubr.f32.gmra.mrb[0].mxu0 %v2027
  %v2220 = vpop.f32.mrb[0].mxu0
  %v2221 = vadd.f32 0.0, %v2220
  %v2222 = vpop.f32.mrb[0].mxu0
  %2223 = vmatprep.mubr.f32.mxu0 0.0
  %2224 = vmatmul.mubr.f32.gmra.mrb[0].mxu0 %v2030
  %v2225 = vpop.f32.mrb[0].mxu0
  %v2226 = vadd.f32 0.0, %v2225
  %v2227 = vpop.f32.mrb[0].mxu0
  %2228 = vmatprep.mubr.f32.mxu0 0.0
  %2229 = vmatmul.mubr.f32.gmra.mrb[0].mxu0 %v2033
  %v2230 = vpop.f32.mrb[0].mxu0
  %v2231 = vadd.f32 0.0, %v2230
  %v2232 = vpop.f32.mrb[0].mxu0
  %2233 = vmatprep.mubr.f32.mxu0 0.0
  %2234 = vmatmul.mubr.f32.gmra.mrb[0].mxu0 %v2036
  %v2235 = vpop.f32.mrb[0].mxu0
  %v2236 = vadd.f32 0.0, %v2235
  %v2237 = vpop.f32.mrb[0].mxu0
  %2238 = vmatprep.mubr.f32.mxu0 0.0
  %2239 = vmatmul.mubr.f32.gmra.mrb[0].mxu0 %v2039
  %v2240 = vpop.f32.mrb[0].mxu0
  %v2241 = vadd.f32 0.0, %v2240
  %v2242 = vpop.f32.mrb[0].mxu0
  %2243 = vmatprep.mubr.f32.mxu0 0.0
  %2244 = vmatmul.mubr.f32.gmra.mrb[0].mxu0 %v2042
  %v2245 = vpop.f32.mrb[0].mxu0
  %v2246 = vadd.f32 0.0, %v2245
  %v2247 = vpop.f32.mrb[0].mxu0
  %2248 = vmatprep.mubr.f32.mxu0 0.0
  %2249 = vmatmul.mubr.f32.gmra.mrb[0].mxu0 %v2045
  %v2250 = vpop.f32.mrb[0].mxu0
  %v2251 = vadd.f32 0.0, %v2250
  %v2252 = vpop.f32.mrb[0].mxu0
  %2253 = vmatprep.mubr.f32.mxu0 0.0
  %2254 = vmatmul.mubr.f32.gmra.mrb[0].mxu0 %v2048
  %v2255 = vpop.f32.mrb[0].mxu0
  %v2256 = vadd.f32 0.0, %v2255
  %v2257 = vpop.f32.mrb[0].mxu0
  %2258 = vmatprep.mubr.f32.mxu0 0.0
  %2259 = vmatmul.mubr.f32.gmra.mrb[0].mxu0 %v2051
  %v2260 = vpop.f32.mrb[0].mxu0
  %v2261 = vadd.f32 0.0, %v2260
  %v2262 = vpop.f32.mrb[0].mxu0
  %2263 = vmatprep.mubr.f32.mxu0 0.0
  %2264 = vmatmul.mubr.f32.gmra.mrb[0].mxu0 %v2054
  %v2265 = vpop.f32.mrb[0].mxu0
  %v2266 = vadd.f32 0.0, %v2265
  %v2267 = vpop.f32.mrb[0].mxu0
  %2268 = vmatprep.mubr.f32.mxu0 0.0
  %2269 = vmatmul.mubr.f32.gmra.mrb[0].mxu0 %v2057
  %v2270 = vpop.f32.mrb[0].mxu0
  %v2271 = vadd.f32 0.0, %v2270
  %v2272 = vpop.f32.mrb[0].mxu0
  %2273 = vmatprep.mubr.f32.mxu0 0.0
  %2274 = vmatmul.mubr.f32.gmra.mrb[0].mxu0 %v2060
  %v2275 = vpop.f32.mrb[0].mxu0
  %v2276 = vadd.f32 0.0, %v2275
  %v2277 = vpop.f32.mrb[0].mxu0
  %2278 = vmatprep.mubr.f32.mxu0 0.0
  %2279 = vmatmul.mubr.f32.gmra.mrb[0].mxu0 %v2063
  %v2280 = vpop.f32.mrb[0].mxu0
  %v2281 = vadd.f32 0.0, %v2280
  %v2282 = vpop.f32.mrb[0].mxu0
  %2283 = vmatprep.mubr.f32.mxu0 0.0
  %2284 = vmatmul.mubr.f32.gmra.mrb[0].mxu0 %v2066
  %v2285 = vpop.f32.mrb[0].mxu0
  %v2286 = vadd.f32 0.0, %v2285
  %v2287 = vpop.f32.mrb[0].mxu0
  %2288 = vmatprep.mubr.f32.mxu0 0.0
  %2289 = vmatmul.mubr.f32.gmra.mrb[0].mxu0 %v2069
  %v2290 = vpop.f32.mrb[0].mxu0
  %v2291 = vadd.f32 0.0, %v2290
  %v2292 = vpop.f32.mrb[0].mxu0
  %2293 = vmatprep.mubr.f32.mxu0 0.0
  %2294 = vmatmul.mubr.f32.gmra.mrb[0].mxu0 %v2072
  %v2295 = vpop.f32.mrb[0].mxu0
  %v2296 = vadd.f32 0.0, %v2295
  %v2297 = vpop.f32.mrb[0].mxu0
  %2298 = vdwg.mxu0
  %v2299 = vtanh.pop %v2141
  %v2300 = vtanh.pop %v2146
  %v2301 = vtanh.pop %v2151
  %v2302 = vtanh.pop %v2156
  %v2303 = vtanh.pop %v2161
  %v2304 = vtanh.pop %v2166
  %v2305 = vtanh.pop %v2171
  %v2306 = vtanh.pop %v2176
  %v2307 = vtanh.pop %v2181
  %v2308 = vtanh.pop %v2186
  %v2309 = vtanh.pop %v2191
  %v2310 = vtanh.pop %v2196
  %v2311 = vtanh.pop %v2201
  %v2312 = vtanh.pop %v2206
  %v2313 = vtanh.pop %v2211
  %v2314 = vtanh.pop %v2216
  %v2315 = vtanh.pop %v2221
  %v2316 = vtanh.pop %v2226
  %v2317 = vtanh.pop %v2231
  %v2318 = vtanh.pop %v2236
  %v2319 = vtanh.pop %v2241
  %v2320 = vtanh.pop %v2246
  %v2321 = vtanh.pop %v2251
  %v2322 = vtanh.pop %v2256
  %v2323 = vtanh.pop %v2261
  %v2324 = vtanh.pop %v2266
  %v2325 = vtanh.pop %v2271
  %v2326 = vtanh.pop %v2276
  %v2327 = vtanh.pop %v2281
  %v2328 = vtanh.pop %v2286
  %v2329 = vtanh.pop %v2291
  %v2330 = vtanh.pop %v2296
  %v2331 = vld [vmem:[%s2 + $0x300] sm:$0xff]
  %v2332 = vld [vmem:[%s2 + $0x308] sm:$0xff]
  %v2333 = vld [vmem:[%s2 + $0x310] sm:$0xff]
  %v2334 = vld [vmem:[%s2 + $0x318] sm:$0xff]
  %v2335 = vld [vmem:[%s2 + $0x320] sm:$0xff]
  %v2336 = vld [vmem:[%s2 + $0x328] sm:$0xff]
  %v2337 = vld [vmem:[%s2 + $0x330] sm:$0xff]
  %v2338 = vld [vmem:[%s2 + $0x338] sm:$0xff]
  %v2339 = vld [vmem:[%s2 + $0x340] sm:$0xff]
  %v2340 = vld [vmem:[%s2 + $0x348] sm:$0xff]
  %v2341 = vld [vmem:[%s2 + $0x350] sm:$0xff]
  %v2342 = vld [vmem:[%s2 + $0x358] sm:$0xff]
  %v2343 = vld [vmem:[%s2 + $0x360] sm:$0xff]
  %v2344 = vld [vmem:[%s2 + $0x368] sm:$0xff]
  %v2345 = vld [vmem:[%s2 + $0x370] sm:$0xff]
  %v2346 = vld [vmem:[%s2 + $0x378] sm:$0xff]
  %v2347 = vld [vmem:[%s2 + $0x380] sm:$0xff]
  %v2348 = vld [vmem:[%s2 + $0x388] sm:$0xff]
  %v2349 = vld [vmem:[%s2 + $0x390] sm:$0xff]
  %v2350 = vld [vmem:[%s2 + $0x398] sm:$0xff]
  %v2351 = vld [vmem:[%s2 + $0x3a0] sm:$0xff]
  %v2352 = vld [vmem:[%s2 + $0x3a8] sm:$0xff]
  %v2353 = vld [vmem:[%s2 + $0x3b0] sm:$0xff]
  %v2354 = vld [vmem:[%s2 + $0x3b8] sm:$0xff]
  %v2355 = vld [vmem:[%s2 + $0x3c0] sm:$0xff]
  %v2356 = vld [vmem:[%s2 + $0x3c8] sm:$0xff]
  %v2357 = vld [vmem:[%s2 + $0x3d0] sm:$0xff]
  %v2358 = vld [vmem:[%s2 + $0x3d8] sm:$0xff]
  %v2359 = vld [vmem:[%s2 + $0x3e0] sm:$0xff]
  %v2360 = vld [vmem:[%s2 + $0x3e8] sm:$0xff]
  %v2361 = vld [vmem:[%s2 + $0x3f0] sm:$0xff]
  %v2362 = vld [vmem:[%s2 + $0x3f8] sm:$0xff]
  %2364 = vset.pattern.permute.xlu0 0
  %2365 = vperm.xlu0 %2364, %v2331
  %v2366 = vpop.permute.xlu0 %2365
  %2369 = vset.pattern.permute.xlu0 0
  %2370 = vperm.xlu0 %2369, %v2332
  %v2371 = vpop.permute.xlu0 %2370
  %2374 = vset.pattern.permute.xlu0 0
  %2375 = vperm.xlu0 %2374, %v2333
  %v2376 = vpop.permute.xlu0 %2375
  %2379 = vset.pattern.permute.xlu0 0
  %2380 = vperm.xlu0 %2379, %v2334
  %v2381 = vpop.permute.xlu0 %2380
  %2384 = vset.pattern.permute.xlu0 0
  %2385 = vperm.xlu0 %2384, %v2335
  %v2386 = vpop.permute.xlu0 %2385
  %2389 = vset.pattern.permute.xlu0 0
  %2390 = vperm.xlu0 %2389, %v2336
  %v2391 = vpop.permute.xlu0 %2390
  %2394 = vset.pattern.permute.xlu0 0
  %2395 = vperm.xlu0 %2394, %v2337
  %v2396 = vpop.permute.xlu0 %2395
  %2399 = vset.pattern.permute.xlu0 0
  %2400 = vperm.xlu0 %2399, %v2338
  %v2401 = vpop.permute.xlu0 %2400
  %2404 = vset.pattern.permute.xlu0 0
  %2405 = vperm.xlu0 %2404, %v2339
  %v2406 = vpop.permute.xlu0 %2405
  %2409 = vset.pattern.permute.xlu0 0
  %2410 = vperm.xlu0 %2409, %v2340
  %v2411 = vpop.permute.xlu0 %2410
  %2414 = vset.pattern.permute.xlu0 0
  %2415 = vperm.xlu0 %2414, %v2341
  %v2416 = vpop.permute.xlu0 %2415
  %2419 = vset.pattern.permute.xlu0 0
  %2420 = vperm.xlu0 %2419, %v2342
  %v2421 = vpop.permute.xlu0 %2420
  %2424 = vset.pattern.permute.xlu0 0
  %2425 = vperm.xlu0 %2424, %v2343
  %v2426 = vpop.permute.xlu0 %2425
  %2429 = vset.pattern.permute.xlu0 0
  %2430 = vperm.xlu0 %2429, %v2344
  %v2431 = vpop.permute.xlu0 %2430
  %2434 = vset.pattern.permute.xlu0 0
  %2435 = vperm.xlu0 %2434, %v2345
  %v2436 = vpop.permute.xlu0 %2435
  %2439 = vset.pattern.permute.xlu0 0
  %2440 = vperm.xlu0 %2439, %v2346
  %v2441 = vpop.permute.xlu0 %2440
  %2444 = vset.pattern.permute.xlu0 0
  %2445 = vperm.xlu0 %2444, %v2347
  %v2446 = vpop.permute.xlu0 %2445
  %2449 = vset.pattern.permute.xlu0 0
  %2450 = vperm.xlu0 %2449, %v2348
  %v2451 = vpop.permute.xlu0 %2450
  %2454 = vset.pattern.permute.xlu0 0
  %2455 = vperm.xlu0 %2454, %v2349
  %v2456 = vpop.permute.xlu0 %2455
  %2459 = vset.pattern.permute.xlu0 0
  %2460 = vperm.xlu0 %2459, %v2350
  %v2461 = vpop.permute.xlu0 %2460
  %2464 = vset.pattern.permute.xlu0 0
  %2465 = vperm.xlu0 %2464, %v2351
  %v2466 = vpop.permute.xlu0 %2465
  %2469 = vset.pattern.permute.xlu0 0
  %2470 = vperm.xlu0 %2469, %v2352
  %v2471 = vpop.permute.xlu0 %2470
  %2474 = vset.pattern.permute.xlu0 0
  %2475 = vperm.xlu0 %2474, %v2353
  %v2476 = vpop.permute.xlu0 %2475
  %2479 = vset.pattern.permute.xlu0 0
  %2480 = vperm.xlu0 %2479, %v2354
  %v2481 = vpop.permute.xlu0 %2480
  %2484 = vset.pattern.permute.xlu0 0
  %2485 = vperm.xlu0 %2484, %v2355
  %v2486 = vpop.permute.xlu0 %2485
  %2489 = vset.pattern.permute.xlu0 0
  %2490 = vperm.xlu0 %2489, %v2356
  %v2491 = vpop.permute.xlu0 %2490
  %2494 = vset.pattern.permute.xlu0 0
  %2495 = vperm.xlu0 %2494, %v2357
  %v2496 = vpop.permute.xlu0 %2495
  %2499 = vset.pattern.permute.xlu0 0
  %2500 = vperm.xlu0 %2499, %v2358
  %v2501 = vpop.permute.xlu0 %2500
  %2504 = vset.pattern.permute.xlu0 0
  %2505 = vperm.xlu0 %2504, %v2359
  %v2506 = vpop.permute.xlu0 %2505
  %2509 = vset.pattern.permute.xlu0 0
  %2510 = vperm.xlu0 %2509, %v2360
  %v2511 = vpop.permute.xlu0 %2510
  %2514 = vset.pattern.permute.xlu0 0
  %2515 = vperm.xlu0 %2514, %v2361
  %v2516 = vpop.permute.xlu0 %2515
  %2519 = vset.pattern.permute.xlu0 0
  %2520 = vperm.xlu0 %2519, %v2362
  %v2521 = vpop.permute.xlu0 %2520
  %v2523 = vmul.f32 %v2299, %v2366
  %v2524 = vmul.f32 %v2300, %v2371
  %v2525 = vmul.f32 %v2301, %v2376
  %v2526 = vmul.f32 %v2302, %v2381
  %v2527 = vmul.f32 %v2303, %v2386
  %v2528 = vmul.f32 %v2304, %v2391
  %v2529 = vmul.f32 %v2305, %v2396
  %v2530 = vmul.f32 %v2306, %v2401
  %v2531 = vmul.f32 %v2307, %v2406
  %v2532 = vmul.f32 %v2308, %v2411
  %v2533 = vmul.f32 %v2309, %v2416
  %v2534 = vmul.f32 %v2310, %v2421
  %v2535 = vmul.f32 %v2311, %v2426
  %v2536 = vmul.f32 %v2312, %v2431
  %v2537 = vmul.f32 %v2313, %v2436
  %v2538 = vmul.f32 %v2314, %v2441
  %v2539 = vmul.f32 %v2315, %v2446
  %v2540 = vmul.f32 %v2316, %v2451
  %v2541 = vmul.f32 %v2317, %v2456
  %v2542 = vmul.f32 %v2318, %v2461
  %v2543 = vmul.f32 %v2319, %v2466
  %v2544 = vmul.f32 %v2320, %v2471
  %v2545 = vmul.f32 %v2321, %v2476
  %v2546 = vmul.f32 %v2322, %v2481
  %v2547 = vmul.f32 %v2323, %v2486
  %v2548 = vmul.f32 %v2324, %v2491
  %v2549 = vmul.f32 %v2325, %v2496
  %v2550 = vmul.f32 %v2326, %v2501
  %v2551 = vmul.f32 %v2327, %v2506
  %v2552 = vmul.f32 %v2328, %v2511
  %v2553 = vmul.f32 %v2329, %v2516
  %v2554 = vmul.f32 %v2330, %v2521
  %v2555 = vadd.f32 %v1914, %v2523
  %v2556 = vadd.f32 %v1915, %v2524
  %v2557 = vadd.f32 %v1916, %v2525
  %v2558 = vadd.f32 %v1917, %v2526
  %v2559 = vadd.f32 %v1918, %v2527
  %v2560 = vadd.f32 %v1919, %v2528
  %v2561 = vadd.f32 %v1920, %v2529
  %v2562 = vadd.f32 %v1921, %v2530
  %v2563 = vadd.f32 %v1922, %v2531
  %v2564 = vadd.f32 %v1923, %v2532
  %v2565 = vadd.f32 %v1924, %v2533
  %v2566 = vadd.f32 %v1925, %v2534
  %v2567 = vadd.f32 %v1926, %v2535
  %v2568 = vadd.f32 %v1927, %v2536
  %v2569 = vadd.f32 %v1928, %v2537
  %v2570 = vadd.f32 %v1929, %v2538
  %v2571 = vadd.f32 %v1930, %v2539
  %v2572 = vadd.f32 %v1931, %v2540
  %v2573 = vadd.f32 %v1932, %v2541
  %v2574 = vadd.f32 %v1933, %v2542
  %v2575 = vadd.f32 %v1934, %v2543
  %v2576 = vadd.f32 %v1935, %v2544
  %v2577 = vadd.f32 %v1936, %v2545
  %v2578 = vadd.f32 %v1937, %v2546
  %v2579 = vadd.f32 %v1938, %v2547
  %v2580 = vadd.f32 %v1939, %v2548
  %v2581 = vadd.f32 %v1940, %v2549
  %v2582 = vadd.f32 %v1941, %v2550
  %v2583 = vadd.f32 %v1942, %v2551
  %v2584 = vadd.f32 %v1943, %v2552
  %v2585 = vadd.f32 %v1944, %v2553
  %v2586 = vadd.f32 %v1945, %v2554
  %v2587 = vadd.f32 %v2555, %v2556
  %v2588 = vadd.f32 %v2587, %v2557
  %v2589 = vadd.f32 %v2588, %v2558
  %v2590 = vadd.f32 %v2589, %v2559
  %v2591 = vadd.f32 %v2590, %v2560
  %v2592 = vadd.f32 %v2591, %v2561
  %v2593 = vadd.f32 %v2592, %v2562
  %v2594 = vadd.f32 %v2593, %v2563
  %v2595 = vadd.f32 %v2594, %v2564
  %v2596 = vadd.f32 %v2595, %v2565
  %v2597 = vadd.f32 %v2596, %v2566
  %v2598 = vadd.f32 %v2597, %v2567
  %v2599 = vadd.f32 %v2598, %v2568
  %v2600 = vadd.f32 %v2599, %v2569
  %v2601 = vadd.f32 %v2600, %v2570
  %v2602 = vadd.f32 %v2601, %v2571
  %v2603 = vadd.f32 %v2602, %v2572
  %v2604 = vadd.f32 %v2603, %v2573
  %v2605 = vadd.f32 %v2604, %v2574
  %v2606 = vadd.f32 %v2605, %v2575
  %v2607 = vadd.f32 %v2606, %v2576
  %v2608 = vadd.f32 %v2607, %v2577
  %v2609 = vadd.f32 %v2608, %v2578
  %v2610 = vadd.f32 %v2609, %v2579
  %v2611 = vadd.f32 %v2610, %v2580
  %v2612 = vadd.f32 %v2611, %v2581
  %v2613 = vadd.f32 %v2612, %v2582
  %v2614 = vadd.f32 %v2613, %v2583
  %v2615 = vadd.f32 %v2614, %v2584
  %v2616 = vadd.f32 %v2615, %v2585
  %v2617 = vadd.f32 %v2616, %v2586
  %v2618 = vrot.slane %v2617, 4
  %v2619 = vadd.f32 %v2617, %v2618
  %v2620 = vrot.slane %v2619, 2
  %v2621 = vadd.f32 %v2619, %v2620
  %v2622 = vrot.slane %v2621, 1
  %v2623 = vadd.f32 %v2621, %v2622
  %s2624 = sld [smem:[#allocation2]]
  %v2625 = vstv %s2624
  %v2626 = vadd.f32 %v2623, %v2625
  %2627 = vst [vmem:[%s4] sm:$0x1] %v2626
  // Predicated region
  $region18: #{least_squares_forward.1} parent=0 // pred_check
    _
  $region19: #{least_squares_forward.1} parent=0 // pred_check_branch
    %2629 = sbr.rel (0) target = $region21
  $region20: #{least_squares_forward.1} parent=0 // pred_region
    _
  $region21: #{least_squares_forward.1} parent=0 // pred_fallthru
    _
  // Predicated region
  $region22: #{least_squares_forward.1} parent=0 // pred_check
    _
  $region23: #{least_squares_forward.1} parent=0 // pred_check_branch
    %2631 = sbr.rel (0) target = $region25
  $region24: #{least_squares_forward.1} parent=0 // pred_region
    _
  $region25: #{least_squares_forward.1} parent=0 // pred_fallthru
    _

</llo_original>
